<compile_context>
chip_gen: v7x
topology: tpu7x:2x2x1
jax: 0.10.0
libtpu: 0.0.40
codegen_flags: <defaults>
</compile_context>

<pallas_src>
import functools
import math

import jax
import jax.numpy as jnp
from jax.experimental import pallas as pl
from jax.experimental.pallas import tpu as pltpu


def _atan2(y, x):
    """atan2 from basic VPU ops + one EUP approx reciprocal.

    Cephes atanf reduction + 4-term polynomial.  The classic two divides
    (z = mn/mx and (z-1)/(z+1)) are folded into a single
    `num * pl.reciprocal(den, approx=True)` on the otherwise-idle EUP slot.
    Max phase error ~1e-4 rad; negligible after soft binning because the
    scatter weights are continuous across bin boundaries.
    """
    ax = jnp.abs(x)
    ay = jnp.abs(y)
    mx = jnp.maximum(ax, ay)
    mn = jnp.minimum(ax, ay)
    # "big" branch (z = mn/mx > tan(pi/8)) decided without the divide.
    big = mn > jnp.float32(0.4142135623730950) * mx
    num = jnp.where(big, mn - mx, mn)
    den = jnp.where(big, mn + mx, mx)
    den = jnp.where(den == 0.0, 1.0, den)          # mx == 0 -> mn == 0 -> w = 0
    w = num * pl.reciprocal(den, approx=True)
    w2 = w * w
    p = (((8.05374449538e-2 * w2 - 1.38776856032e-1) * w2
          + 1.99777106478e-1) * w2 - 3.33329491539e-1) * w2 * w + w
    a = jnp.where(big, jnp.float32(math.pi / 4) + p, p)      # atan(z), z in [0,1]
    a = jnp.where(ay > ax, jnp.float32(math.pi / 2) - a, a)
    a = jnp.where(x < 0.0, jnp.float32(math.pi) - a, a)
    return jnp.where(y < 0.0, -a, a)


def _pick_strip_rows(H, cell_size, block_size, cap=128):
    """Largest block_size-aligned strip height <= cap that divides H.

    Prefers strips whose cell count is a multiple of 8 so the output block
    stays sublane-aligned when there is more than one strip.
    """
    if H <= cap:
        return H
    cands = [s for s in range(block_size, cap + 1, block_size) if H % s == 0]
    aligned = [s for s in cands if (s // cell_size) % 8 == 0]
    return max(aligned) if aligned else max(cands)


def _hog_kernel(x_ref, top_ref, bot_ref, bias_ref, ph_ref, pw_ref, mh_ref,
                mw_ref, out_ref, *, C, S, W, nbins, max_angle, eps):
    i = pl.program_id(1)
    inv_c = jnp.float32(1.0 / C)

    # ---- fused grayscale (channel mean) of the strip and its halo rows ----
    g = x_ref[0, 0]
    for c in range(1, C):
        g = g + x_ref[0, c]
    g = g * inv_c                                            # (S, W)

    # Halo rows sit at sublane offset 0 (edge-clamped) or 7 inside their
    # 8-row halo blocks (see the clamped index_maps in the wrapper).
    off_t = jnp.where(i == 0, 0, 7)
    off_b = jnp.where(i == pl.num_programs(1) - 1, 7, 0)
    gt = top_ref[0, 0, pl.ds(off_t, 1), :]
    gb = bot_ref[0, 0, pl.ds(off_b, 1), :]
    for c in range(1, C):
        gt = gt + top_ref[0, c, pl.ds(off_t, 1), :]
        gb = gb + bot_ref[0, c, pl.ds(off_b, 1), :]
    gt = gt * inv_c                                          # (1, W)
    gb = gb * inv_c

    g_ext = jnp.concatenate([gt, g, gb], axis=0)             # (S+2, W)

    # ---- separable Sobel (replication pad in W via clamped lane shifts) ----
    gl = jnp.concatenate([g_ext[:, :1], g_ext[:, :W - 1]], axis=1)   # col j-1
    gr = jnp.concatenate([g_ext[:, 1:], g_ext[:, W - 1:]], axis=1)   # col j+1
    rs = gl + 2.0 * g_ext + gr               # row smooth    (S+2, W)
    rd = gl - gr                             # row diff      (S+2, W)
    # filter 0: [[1,0,-1],[2,0,-2],[1,0,-1]]  filter 1: [[1,2,1],[0,0,0],[-1,-2,-1]]
    gx = rd[0:S] + 2.0 * rd[1:S + 1] + rd[2:S + 2] + bias_ref[0]
    gy = rs[0:S] - rs[2:S + 2] + bias_ref[1]

    # ---- magnitude / phase / soft 2-bin scatter (torch scatter_ semantics) --
    mag = jnp.sqrt(gx * gx + gy * gy)
    phase = _atan2(gy, gx)
    phase_int = phase * jnp.float32(nbins / max_angle)
    # module quirk: literally `phase_int[phase_int < 0] += 9` (9, not nbins)
    phase_int = jnp.where(phase_int < 0.0, phase_int + 9.0, phase_int)
    trunc = phase_int.astype(jnp.int32)                      # trunc toward zero
    trunc_f = trunc.astype(jnp.float32)
    floor_i = jnp.where(trunc_f > phase_int, trunc - 1, trunc)
    floor_f = floor_i.astype(jnp.float32)
    ceil_f = jnp.where(trunc_f < phase_int, trunc_f + 1.0, trunc_f)
    w_ceil = mag * (phase_int - floor_f)     # scatter #1 -> bin ceil % nbins
    w_floor = mag * (ceil_f - phase_int)     # scatter #2 -> bin floor % nbins (wins on collision)
    # floor_i in [-1, nbins]; wrap into [0, nbins)
    floor_mod = jnp.where(floor_i < 0, floor_i + nbins,
                          jnp.where(floor_i >= nbins, floor_i - nbins, floor_i))

    # One compare per bin: the ceil term of bin b reuses the floor mask of bin
    # (b-1) % nbins, since ceil == floor + 1 except when phase_int is an exact
    # integer -- and then both weights are exactly 0, so the torch
    # overwrite-on-collision semantics are preserved.
    eq = [floor_mod == b for b in range(nbins)]
    hists = [jnp.where(eq[b], w_floor,
                       jnp.where(eq[(b - 1) % nbins], w_ceil, 0.0))
             for b in range(nbins)]
    hist_all = jnp.concatenate(hists, axis=1)                # (S, nbins*W)

    # ---- AvgPool2d(cell): one batched row-pool matmul + tiny col pools ----
    rowpool = jnp.dot(ph_ref[...], hist_all,
                      preferred_element_type=jnp.float32)    # (Sc, nbins*W)
    pw = pw_ref[...]                                         # (W, Wc)
    pooled = []
    sq = None
    for b in range(nbins):
        pb = jnp.dot(rowpool[:, b * W:(b + 1) * W], pw,
                     preferred_element_type=jnp.float32)     # (Sc, Wc)
        pooled.append(pb)
        sq = pb * pb if sq is None else sq + pb * pb

    # ---- L2 block normalization over (nbins x ncell x ncell) per block ----
    den = jnp.dot(jnp.dot(mh_ref[...], sq, preferred_element_type=jnp.float32),
                  mw_ref[...], preferred_element_type=jnp.float32)   # (Sc, Wc)
    inv = jax.lax.rsqrt(den + jnp.float32(eps * eps))        # out/sqrt(sum+eps^2)
    slab = jnp.concatenate(pooled, axis=1)                   # (Sc, nbins*Wc)
    inv_slab = jnp.concatenate([inv] * nbins, axis=1)
    out_ref[0] = slab * inv_slab


class HOGDescriptorByConvPallas:
    def __init__(self, nbins=10, cell_size=8, block_size=16, max_angle=math.pi,
                 padding=1, eps=1e-5, norm='L2', key=None):
        assert norm == 'L2', "only the default norm='L2' path is implemented"
        assert padding == 1, "kernel hard-codes the 3x3 conv + 1px replication pad"
        self.nbins = nbins
        self.cell_size = cell_size
        self.block_size = block_size
        self.max_angle = max_angle
        self.padding = padding
        self.eps = eps
        # nn.Conv2d(1, 2, 3) keeps its default-initialized bias (only the
        # weight is overridden with the Sobel filters).  Deterministic init.
        if key is None:
            key = jax.random.PRNGKey(42)
        bound = 1.0 / math.sqrt(1 * 3 * 3)
        self.bias = jax.random.uniform(key, (2,), jnp.float32, -bound, bound)

    def __call__(self, x):
        N, C, H, W = x.shape
        assert H % self.block_size == 0 and W % self.block_size == 0
        x = x.astype(jnp.float32)

        cell = self.cell_size
        nbins = self.nbins
        Hc, Wc = H // cell, W // cell
        ncell = self.block_size // cell
        S = _pick_strip_rows(H, cell, self.block_size)       # rows per strip
        Sc = S // cell
        nstrip = H // S
        h8 = S // 8                                          # strip height in 8-row blocks
        nblk8 = H // 8                                       # image height in 8-row blocks

        # pooling matrices (average over cell x cell windows), strip-local
        pool_h = (jnp.arange(Sc)[:, None] ==
                  (jnp.arange(S)[None, :] // cell)).astype(jnp.float32) / cell   # (Sc, S)
        pool_w = ((jnp.arange(W)[:, None] // cell) ==
                  jnp.arange(Wc)[None, :]).astype(jnp.float32) / cell            # (W, Wc)
        # block-membership masks (ncell x ncell groups of cells)
        bh = jnp.arange(Sc) // ncell
        mh = (bh[:, None] == bh[None, :]).astype(jnp.float32)                    # (Sc, Sc)
        bw = jnp.arange(Wc) // ncell
        mw = (bw[:, None] == bw[None, :]).astype(jnp.float32)                    # (Wc, Wc)

        kernel = functools.partial(
            _hog_kernel, C=C, S=S, W=W, nbins=nbins,
            max_angle=self.max_angle, eps=self.eps)

        out = pl.pallas_call(
            kernel,
            out_shape=jax.ShapeDtypeStruct((N, Hc, nbins * Wc), jnp.float32),
            grid=(N, nstrip),
            in_specs=[
                # main row strip of the raw NCHW input (gray/pad fused in-kernel)
                pl.BlockSpec((1, C, S, W), lambda n, i: (n, 0, i, 0)),
                # 8-row blocks holding the edge-clamped halo row above / below
                pl.BlockSpec((1, C, 8, W),
                             lambda n, i: (n, 0, jnp.maximum(i * h8 - 1, 0), 0)),
                pl.BlockSpec((1, C, 8, W),
                             lambda n, i: (n, 0,
                                           jnp.minimum((i + 1) * h8, nblk8 - 1), 0)),
                pl.BlockSpec(memory_space=pltpu.SMEM),        # conv bias (2,)
                pl.BlockSpec((Sc, S), lambda n, i: (0, 0)),
                pl.BlockSpec((W, Wc), lambda n, i: (0, 0)),
                pl.BlockSpec((Sc, Sc), lambda n, i: (0, 0)),
                pl.BlockSpec((Wc, Wc), lambda n, i: (0, 0)),
            ],
            out_specs=pl.BlockSpec((1, Sc, nbins * Wc), lambda n, i: (n, i, 0)),
            compiler_params=pltpu.CompilerParams(
                dimension_semantics=("parallel", "parallel"),
                # above the v5e/v6e scoped defaults (16/32 MiB), safely under
                # v7x's 64 MiB physical VMEM for the capped strip size.
                vmem_limit_bytes=48 * 1024 * 1024),
        )(x, x, x, self.bias, pool_h, pool_w, mh, mw)

        # lane-dense (N, Hc, nbins*Wc) slab -> module's NCHW (N, nbins, Hc, Wc)
        return out.reshape(N, Hc, nbins, Wc).transpose(0, 2, 1, 3)


if __name__ == "__main__":
    key = jax.random.PRNGKey(0)
    x = jax.random.normal(key, (2, 4, 16, 16), dtype=jnp.float32)   # NCHW
    hog = HOGDescriptorByConvPallas(key=jax.random.PRNGKey(1))
    out = hog(x)
    out = jax.block_until_ready(out)
    assert out.shape == (2, 10, 2, 2), out.shape
    assert bool(jnp.all(jnp.isfinite(out)))
    print("KERNEL_OK")
</pallas_src>

<mosaic_0001>
module attributes {stable_mosaic.version = 11 : i64} {
  func.func @_hog_kernel(%arg0: i32, %arg1: i32, %arg2: memref<1x4x16x16xf32, #tpu.memory_space<vmem>>, %arg3: memref<1x4x8x16xf32, #tpu.memory_space<vmem>>, %arg4: memref<1x4x8x16xf32, #tpu.memory_space<vmem>>, %arg5: memref<2xf32, #tpu.memory_space<smem>>, %arg6: memref<2x16xf32, #tpu.memory_space<vmem>>, %arg7: memref<16x2xf32, #tpu.memory_space<vmem>>, %arg8: memref<2x2xf32, #tpu.memory_space<vmem>>, %arg9: memref<2x2xf32, #tpu.memory_space<vmem>>, %arg10: memref<1x2x20xf32, #tpu.memory_space<vmem>>) attributes {dimension_semantics = [#tpu.dimension_semantics<parallel>, #tpu.dimension_semantics<parallel>], iteration_bounds = array<i64: 2, 1>, scalar_prefetch = 0 : i64, scratch_operands = 0 : i64, tpu.core_type = #tpu.core_type<tc>, window_params = [{transform_indices = @transform_0, window_bounds = array<i64: 1, 4, 16, 16>}, {transform_indices = @transform_1, window_bounds = array<i64: 1, 4, 8, 16>}, {transform_indices = @transform_2, window_bounds = array<i64: 1, 4, 8, 16>}, {transform_indices = @transform_3, window_bounds = array<i64: 2>}, {pipeline_mode = #tpu.pipeline_mode<synchronous>, transform_indices = @transform_4, window_bounds = array<i64: 2, 16>}, {pipeline_mode = #tpu.pipeline_mode<synchronous>, transform_indices = @transform_5, window_bounds = array<i64: 16, 2>}, {pipeline_mode = #tpu.pipeline_mode<synchronous>, transform_indices = @transform_6, window_bounds = array<i64: 2, 2>}, {pipeline_mode = #tpu.pipeline_mode<synchronous>, transform_indices = @transform_7, window_bounds = array<i64: 2, 2>}, {transform_indices = @transform_8, window_bounds = array<i64: 1, 2, 20>}]} {
    %c0 = arith.constant 0 : index
    %c0_0 = arith.constant 0 : index
    %c0_1 = arith.constant 0 : index
    %c0_2 = arith.constant 0 : index
    %0 = vector.load %arg2[%c0, %c0_0, %c0_1, %c0_2] : memref<1x4x16x16xf32, #tpu.memory_space<vmem>>, vector<1x1x16x16xf32>
    %1 = vector.shape_cast %0 : vector<1x1x16x16xf32> to vector<16x16xf32>
    %c0_3 = arith.constant 0 : index
    %c1 = arith.constant 1 : index
    %c0_4 = arith.constant 0 : index
    %c0_5 = arith.constant 0 : index
    %2 = vector.load %arg2[%c0_3, %c1, %c0_4, %c0_5] : memref<1x4x16x16xf32, #tpu.memory_space<vmem>>, vector<1x1x16x16xf32>
    %3 = vector.shape_cast %2 : vector<1x1x16x16xf32> to vector<16x16xf32>
    %4 = arith.addf %1, %3 : vector<16x16xf32>
    %c0_6 = arith.constant 0 : index
    %c2 = arith.constant 2 : index
    %c0_7 = arith.constant 0 : index
    %c0_8 = arith.constant 0 : index
    %5 = vector.load %arg2[%c0_6, %c2, %c0_7, %c0_8] : memref<1x4x16x16xf32, #tpu.memory_space<vmem>>, vector<1x1x16x16xf32>
    %6 = vector.shape_cast %5 : vector<1x1x16x16xf32> to vector<16x16xf32>
    %7 = arith.addf %4, %6 : vector<16x16xf32>
    %c0_9 = arith.constant 0 : index
    %c3 = arith.constant 3 : index
    %c0_10 = arith.constant 0 : index
    %c0_11 = arith.constant 0 : index
    %8 = vector.load %arg2[%c0_9, %c3, %c0_10, %c0_11] : memref<1x4x16x16xf32, #tpu.memory_space<vmem>>, vector<1x1x16x16xf32>
    %9 = vector.shape_cast %8 : vector<1x1x16x16xf32> to vector<16x16xf32>
    %10 = arith.addf %7, %9 : vector<16x16xf32>
    %cst = arith.constant 2.500000e-01 : f32
    %11 = vector.broadcast %cst : f32 to vector<16x16xf32>
    %12 = arith.mulf %10, %11 : vector<16x16xf32>
    %c0_i32 = arith.constant 0 : i32
    %13 = arith.cmpi eq, %arg1, %c0_i32 : i32
    %c0_i32_12 = arith.constant 0 : i32
    %c7_i32 = arith.constant 7 : i32
    %14 = arith.select %13, %c0_i32_12, %c7_i32 : i32
    %c0_i32_13 = arith.constant 0 : i32
    %15 = arith.cmpi eq, %arg1, %c0_i32_13 : i32
    %c7_i32_14 = arith.constant 7 : i32
    %c0_i32_15 = arith.constant 0 : i32
    %16 = arith.select %15, %c7_i32_14, %c0_i32_15 : i32
    %c0_16 = arith.constant 0 : index
    %c0_17 = arith.constant 0 : index
    %17 = arith.index_cast %14 : i32 to index
    %c0_18 = arith.constant 0 : index
    %18 = vector.load %arg3[%c0_16, %c0_17, %17, %c0_18] : memref<1x4x8x16xf32, #tpu.memory_space<vmem>>, vector<1x1x1x16xf32>
    %19 = vector.shape_cast %18 : vector<1x1x1x16xf32> to vector<1x16xf32>
    %c0_19 = arith.constant 0 : index
    %c0_20 = arith.constant 0 : index
    %20 = arith.index_cast %16 : i32 to index
    %c0_21 = arith.constant 0 : index
    %21 = vector.load %arg4[%c0_19, %c0_20, %20, %c0_21] : memref<1x4x8x16xf32, #tpu.memory_space<vmem>>, vector<1x1x1x16xf32>
    %22 = vector.shape_cast %21 : vector<1x1x1x16xf32> to vector<1x16xf32>
    %c0_22 = arith.constant 0 : index
    %c1_23 = arith.constant 1 : index
    %23 = arith.index_cast %14 : i32 to index
    %c0_24 = arith.constant 0 : index
    %24 = vector.load %arg3[%c0_22, %c1_23, %23, %c0_24] : memref<1x4x8x16xf32, #tpu.memory_space<vmem>>, vector<1x1x1x16xf32>
    %25 = vector.shape_cast %24 : vector<1x1x1x16xf32> to vector<1x16xf32>
    %26 = arith.addf %19, %25 : vector<1x16xf32>
    %c0_25 = arith.constant 0 : index
    %c1_26 = arith.constant 1 : index
    %27 = arith.index_cast %16 : i32 to index
    %c0_27 = arith.constant 0 : index
    %28 = vector.load %arg4[%c0_25, %c1_26, %27, %c0_27] : memref<1x4x8x16xf32, #tpu.memory_space<vmem>>, vector<1x1x1x16xf32>
    %29 = vector.shape_cast %28 : vector<1x1x1x16xf32> to vector<1x16xf32>
    %30 = arith.addf %22, %29 : vector<1x16xf32>
    %c0_28 = arith.constant 0 : index
    %c2_29 = arith.constant 2 : index
    %31 = arith.index_cast %14 : i32 to index
    %c0_30 = arith.constant 0 : index
    %32 = vector.load %arg3[%c0_28, %c2_29, %31, %c0_30] : memref<1x4x8x16xf32, #tpu.memory_space<vmem>>, vector<1x1x1x16xf32>
    %33 = vector.shape_cast %32 : vector<1x1x1x16xf32> to vector<1x16xf32>
    %34 = arith.addf %26, %33 : vector<1x16xf32>
    %c0_31 = arith.constant 0 : index
    %c2_32 = arith.constant 2 : index
    %35 = arith.index_cast %16 : i32 to index
    %c0_33 = arith.constant 0 : index
    %36 = vector.load %arg4[%c0_31, %c2_32, %35, %c0_33] : memref<1x4x8x16xf32, #tpu.memory_space<vmem>>, vector<1x1x1x16xf32>
    %37 = vector.shape_cast %36 : vector<1x1x1x16xf32> to vector<1x16xf32>
    %38 = arith.addf %30, %37 : vector<1x16xf32>
    %c0_34 = arith.constant 0 : index
    %c3_35 = arith.constant 3 : index
    %39 = arith.index_cast %14 : i32 to index
    %c0_36 = arith.constant 0 : index
    %40 = vector.load %arg3[%c0_34, %c3_35, %39, %c0_36] : memref<1x4x8x16xf32, #tpu.memory_space<vmem>>, vector<1x1x1x16xf32>
    %41 = vector.shape_cast %40 : vector<1x1x1x16xf32> to vector<1x16xf32>
    %42 = arith.addf %34, %41 : vector<1x16xf32>
    %c0_37 = arith.constant 0 : index
    %c3_38 = arith.constant 3 : index
    %43 = arith.index_cast %16 : i32 to index
    %c0_39 = arith.constant 0 : index
    %44 = vector.load %arg4[%c0_37, %c3_38, %43, %c0_39] : memref<1x4x8x16xf32, #tpu.memory_space<vmem>>, vector<1x1x1x16xf32>
    %45 = vector.shape_cast %44 : vector<1x1x1x16xf32> to vector<1x16xf32>
    %46 = arith.addf %38, %45 : vector<1x16xf32>
    %cst_40 = arith.constant 2.500000e-01 : f32
    %47 = vector.broadcast %cst_40 : f32 to vector<1x16xf32>
    %48 = arith.mulf %42, %47 : vector<1x16xf32>
    %cst_41 = arith.constant 2.500000e-01 : f32
    %49 = vector.broadcast %cst_41 : f32 to vector<1x16xf32>
    %50 = arith.mulf %46, %49 : vector<1x16xf32>
    %51 = tpu.concatenate %48, %12, %50 in 0 : vector<1x16xf32>, vector<16x16xf32>, vector<1x16xf32> -> vector<18x16xf32>
    %52 = vector.extract_strided_slice %51 {offsets = [0, 0], sizes = [18, 1], strides = [1, 1]} : vector<18x16xf32> to vector<18x1xf32>
    %53 = vector.extract_strided_slice %51 {offsets = [0, 0], sizes = [18, 15], strides = [1, 1]} : vector<18x16xf32> to vector<18x15xf32>
    %54 = tpu.concatenate %52, %53 in 1 : vector<18x1xf32>, vector<18x15xf32> -> vector<18x16xf32>
    %55 = vector.extract_strided_slice %51 {offsets = [0, 1], sizes = [18, 15], strides = [1, 1]} : vector<18x16xf32> to vector<18x15xf32>
    %56 = vector.extract_strided_slice %51 {offsets = [0, 15], sizes = [18, 1], strides = [1, 1]} : vector<18x16xf32> to vector<18x1xf32>
    %57 = tpu.concatenate %55, %56 in 1 : vector<18x15xf32>, vector<18x1xf32> -> vector<18x16xf32>
    %cst_42 = arith.constant 2.000000e+00 : f32
    %58 = vector.broadcast %cst_42 : f32 to vector<18x16xf32>
    %59 = arith.mulf %58, %51 : vector<18x16xf32>
    %60 = arith.addf %54, %59 : vector<18x16xf32>
    %61 = arith.addf %60, %57 : vector<18x16xf32>
    %62 = arith.subf %54, %57 : vector<18x16xf32>
    %63 = vector.extract_strided_slice %62 {offsets = [0, 0], sizes = [16, 16], strides = [1, 1]} : vector<18x16xf32> to vector<16x16xf32>
    %64 = vector.extract_strided_slice %62 {offsets = [1, 0], sizes = [16, 16], strides = [1, 1]} : vector<18x16xf32> to vector<16x16xf32>
    %cst_43 = arith.constant 2.000000e+00 : f32
    %65 = vector.broadcast %cst_43 : f32 to vector<16x16xf32>
    %66 = arith.mulf %65, %64 : vector<16x16xf32>
    %67 = arith.addf %63, %66 : vector<16x16xf32>
    %68 = vector.extract_strided_slice %62 {offsets = [2, 0], sizes = [16, 16], strides = [1, 1]} : vector<18x16xf32> to vector<16x16xf32>
    %69 = arith.addf %67, %68 : vector<16x16xf32>
    %c0_44 = arith.constant 0 : index
    %70 = memref.load %arg5[%c0_44] : memref<2xf32, #tpu.memory_space<smem>>
    %71 = vector.broadcast %70 : f32 to vector<16x16xf32>
    %72 = arith.addf %69, %71 : vector<16x16xf32>
    %73 = vector.extract_strided_slice %61 {offsets = [0, 0], sizes = [16, 16], strides = [1, 1]} : vector<18x16xf32> to vector<16x16xf32>
    %74 = vector.extract_strided_slice %61 {offsets = [2, 0], sizes = [16, 16], strides = [1, 1]} : vector<18x16xf32> to vector<16x16xf32>
    %75 = arith.subf %73, %74 : vector<16x16xf32>
    %c1_45 = arith.constant 1 : index
    %76 = memref.load %arg5[%c1_45] : memref<2xf32, #tpu.memory_space<smem>>
    %77 = vector.broadcast %76 : f32 to vector<16x16xf32>
    %78 = arith.addf %75, %77 : vector<16x16xf32>
    %79 = arith.mulf %72, %72 : vector<16x16xf32>
    %80 = arith.mulf %78, %78 : vector<16x16xf32>
    %81 = arith.addf %79, %80 : vector<16x16xf32>
    %82 = math.sqrt %81 : vector<16x16xf32>
    %83 = math.absf %72 : vector<16x16xf32>
    %84 = math.absf %78 : vector<16x16xf32>
    %85 = arith.maximumf %83, %84 : vector<16x16xf32>
    %86 = arith.minimumf %83, %84 : vector<16x16xf32>
    %cst_46 = arith.constant 0.414213568 : f32
    %87 = vector.broadcast %cst_46 : f32 to vector<16x16xf32>
    %88 = arith.mulf %87, %85 : vector<16x16xf32>
    %89 = arith.cmpf ogt, %86, %88 : vector<16x16xf32>
    %90 = arith.subf %86, %85 : vector<16x16xf32>
    %91 = arith.select %89, %90, %86 : vector<16x16xi1>, vector<16x16xf32>
    %92 = arith.addf %86, %85 : vector<16x16xf32>
    %93 = arith.select %89, %92, %85 : vector<16x16xi1>, vector<16x16xf32>
    %cst_47 = arith.constant 0.000000e+00 : f32
    %94 = vector.broadcast %cst_47 : f32 to vector<16x16xf32>
    %95 = arith.cmpf oeq, %93, %94 : vector<16x16xf32>
    %cst_48 = arith.constant 1.000000e+00 : f32
    %96 = vector.broadcast %cst_48 : f32 to vector<16x16xf32>
    %97 = arith.select %95, %96, %93 : vector<16x16xi1>, vector<16x16xf32>
    %98 = tpu.reciprocal %97 {approx = true} : vector<16x16xf32> -> vector<16x16xf32>
    %99 = arith.mulf %91, %98 : vector<16x16xf32>
    %100 = arith.mulf %99, %99 : vector<16x16xf32>
    %cst_49 = arith.constant 0.0805374458 : f32
    %101 = vector.broadcast %cst_49 : f32 to vector<16x16xf32>
    %102 = arith.mulf %101, %100 : vector<16x16xf32>
    %cst_50 = arith.constant 0.138776854 : f32
    %103 = vector.broadcast %cst_50 : f32 to vector<16x16xf32>
    %104 = arith.subf %102, %103 : vector<16x16xf32>
    %105 = arith.mulf %104, %100 : vector<16x16xf32>
    %cst_51 = arith.constant 0.199777111 : f32
    %106 = vector.broadcast %cst_51 : f32 to vector<16x16xf32>
    %107 = arith.addf %105, %106 : vector<16x16xf32>
    %108 = arith.mulf %107, %100 : vector<16x16xf32>
    %cst_52 = arith.constant 0.333329499 : f32
    %109 = vector.broadcast %cst_52 : f32 to vector<16x16xf32>
    %110 = arith.subf %108, %109 : vector<16x16xf32>
    %111 = arith.mulf %110, %100 : vector<16x16xf32>
    %112 = arith.mulf %111, %99 : vector<16x16xf32>
    %113 = arith.addf %112, %99 : vector<16x16xf32>
    %cst_53 = arith.constant 0.785398185 : f32
    %114 = vector.broadcast %cst_53 : f32 to vector<16x16xf32>
    %115 = arith.addf %114, %113 : vector<16x16xf32>
    %116 = arith.select %89, %115, %113 : vector<16x16xi1>, vector<16x16xf32>
    %117 = arith.cmpf ogt, %84, %83 : vector<16x16xf32>
    %cst_54 = arith.constant 1.57079637 : f32
    %118 = vector.broadcast %cst_54 : f32 to vector<16x16xf32>
    %119 = arith.subf %118, %116 : vector<16x16xf32>
    %120 = arith.select %117, %119, %116 : vector<16x16xi1>, vector<16x16xf32>
    %cst_55 = arith.constant 0.000000e+00 : f32
    %121 = vector.broadcast %cst_55 : f32 to vector<16x16xf32>
    %122 = arith.cmpf olt, %72, %121 : vector<16x16xf32>
    %cst_56 = arith.constant 3.14159274 : f32
    %123 = vector.broadcast %cst_56 : f32 to vector<16x16xf32>
    %124 = arith.subf %123, %120 : vector<16x16xf32>
    %125 = arith.select %122, %124, %120 : vector<16x16xi1>, vector<16x16xf32>
    %cst_57 = arith.constant 0.000000e+00 : f32
    %126 = vector.broadcast %cst_57 : f32 to vector<16x16xf32>
    %127 = arith.cmpf olt, %78, %126 : vector<16x16xf32>
    %cst_58 = arith.constant 0.000000e+00 : f32
    %128 = vector.broadcast %cst_58 : f32 to vector<16x16xf32>
    %129 = arith.subf %128, %125 : vector<16x16xf32>
    %130 = arith.select %127, %129, %125 : vector<16x16xi1>, vector<16x16xf32>
    %cst_59 = arith.constant 3.18309879 : f32
    %131 = vector.broadcast %cst_59 : f32 to vector<16x16xf32>
    %132 = arith.mulf %130, %131 : vector<16x16xf32>
    %cst_60 = arith.constant 0.000000e+00 : f32
    %133 = vector.broadcast %cst_60 : f32 to vector<16x16xf32>
    %134 = arith.cmpf olt, %132, %133 : vector<16x16xf32>
    %cst_61 = arith.constant 9.000000e+00 : f32
    %135 = vector.broadcast %cst_61 : f32 to vector<16x16xf32>
    %136 = arith.addf %132, %135 : vector<16x16xf32>
    %137 = arith.select %134, %136, %132 : vector<16x16xi1>, vector<16x16xf32>
    %138 = arith.fptosi %137 : vector<16x16xf32> to vector<16x16xi32>
    %139 = arith.sitofp %138 : vector<16x16xi32> to vector<16x16xf32>
    %140 = arith.cmpf ogt, %139, %137 : vector<16x16xf32>
    %c1_i32 = arith.constant 1 : i32
    %141 = vector.broadcast %c1_i32 : i32 to vector<16x16xi32>
    %142 = arith.subi %138, %141 : vector<16x16xi32>
    %143 = arith.select %140, %142, %138 : vector<16x16xi1>, vector<16x16xi32>
    %144 = arith.sitofp %143 : vector<16x16xi32> to vector<16x16xf32>
    %145 = arith.cmpf olt, %139, %137 : vector<16x16xf32>
    %cst_62 = arith.constant 1.000000e+00 : f32
    %146 = vector.broadcast %cst_62 : f32 to vector<16x16xf32>
    %147 = arith.addf %139, %146 : vector<16x16xf32>
    %148 = arith.select %145, %147, %139 : vector<16x16xi1>, vector<16x16xf32>
    %149 = arith.subf %137, %144 : vector<16x16xf32>
    %150 = arith.mulf %82, %149 : vector<16x16xf32>
    %151 = arith.subf %148, %137 : vector<16x16xf32>
    %152 = arith.mulf %82, %151 : vector<16x16xf32>
    %c0_i32_63 = arith.constant 0 : i32
    %153 = vector.broadcast %c0_i32_63 : i32 to vector<16x16xi32>
    %154 = arith.cmpi slt, %143, %153 : vector<16x16xi32>
    %c10_i32 = arith.constant 10 : i32
    %155 = vector.broadcast %c10_i32 : i32 to vector<16x16xi32>
    %156 = arith.addi %143, %155 : vector<16x16xi32>
    %c10_i32_64 = arith.constant 10 : i32
    %157 = vector.broadcast %c10_i32_64 : i32 to vector<16x16xi32>
    %158 = arith.cmpi sge, %143, %157 : vector<16x16xi32>
    %c10_i32_65 = arith.constant 10 : i32
    %159 = vector.broadcast %c10_i32_65 : i32 to vector<16x16xi32>
    %160 = arith.subi %143, %159 : vector<16x16xi32>
    %161 = arith.select %158, %160, %143 : vector<16x16xi1>, vector<16x16xi32>
    %162 = arith.select %154, %156, %161 : vector<16x16xi1>, vector<16x16xi32>
    %c0_i32_66 = arith.constant 0 : i32
    %163 = vector.broadcast %c0_i32_66 : i32 to vector<16x16xi32>
    %164 = arith.cmpi eq, %162, %163 : vector<16x16xi32>
    %c1_i32_67 = arith.constant 1 : i32
    %165 = vector.broadcast %c1_i32_67 : i32 to vector<16x16xi32>
    %166 = arith.cmpi eq, %162, %165 : vector<16x16xi32>
    %c2_i32 = arith.constant 2 : i32
    %167 = vector.broadcast %c2_i32 : i32 to vector<16x16xi32>
    %168 = arith.cmpi eq, %162, %167 : vector<16x16xi32>
    %c3_i32 = arith.constant 3 : i32
    %169 = vector.broadcast %c3_i32 : i32 to vector<16x16xi32>
    %170 = arith.cmpi eq, %162, %169 : vector<16x16xi32>
    %c4_i32 = arith.constant 4 : i32
    %171 = vector.broadcast %c4_i32 : i32 to vector<16x16xi32>
    %172 = arith.cmpi eq, %162, %171 : vector<16x16xi32>
    %c5_i32 = arith.constant 5 : i32
    %173 = vector.broadcast %c5_i32 : i32 to vector<16x16xi32>
    %174 = arith.cmpi eq, %162, %173 : vector<16x16xi32>
    %c6_i32 = arith.constant 6 : i32
    %175 = vector.broadcast %c6_i32 : i32 to vector<16x16xi32>
    %176 = arith.cmpi eq, %162, %175 : vector<16x16xi32>
    %c7_i32_68 = arith.constant 7 : i32
    %177 = vector.broadcast %c7_i32_68 : i32 to vector<16x16xi32>
    %178 = arith.cmpi eq, %162, %177 : vector<16x16xi32>
    %c8_i32 = arith.constant 8 : i32
    %179 = vector.broadcast %c8_i32 : i32 to vector<16x16xi32>
    %180 = arith.cmpi eq, %162, %179 : vector<16x16xi32>
    %c9_i32 = arith.constant 9 : i32
    %181 = vector.broadcast %c9_i32 : i32 to vector<16x16xi32>
    %182 = arith.cmpi eq, %162, %181 : vector<16x16xi32>
    %cst_69 = arith.constant 0.000000e+00 : f32
    %183 = vector.broadcast %cst_69 : f32 to vector<16x16xf32>
    %184 = arith.select %182, %150, %183 : vector<16x16xi1>, vector<16x16xf32>
    %185 = arith.select %164, %152, %184 : vector<16x16xi1>, vector<16x16xf32>
    %cst_70 = arith.constant 0.000000e+00 : f32
    %186 = vector.broadcast %cst_70 : f32 to vector<16x16xf32>
    %187 = arith.select %164, %150, %186 : vector<16x16xi1>, vector<16x16xf32>
    %188 = arith.select %166, %152, %187 : vector<16x16xi1>, vector<16x16xf32>
    %cst_71 = arith.constant 0.000000e+00 : f32
    %189 = vector.broadcast %cst_71 : f32 to vector<16x16xf32>
    %190 = arith.select %166, %150, %189 : vector<16x16xi1>, vector<16x16xf32>
    %191 = arith.select %168, %152, %190 : vector<16x16xi1>, vector<16x16xf32>
    %cst_72 = arith.constant 0.000000e+00 : f32
    %192 = vector.broadcast %cst_72 : f32 to vector<16x16xf32>
    %193 = arith.select %168, %150, %192 : vector<16x16xi1>, vector<16x16xf32>
    %194 = arith.select %170, %152, %193 : vector<16x16xi1>, vector<16x16xf32>
    %cst_73 = arith.constant 0.000000e+00 : f32
    %195 = vector.broadcast %cst_73 : f32 to vector<16x16xf32>
    %196 = arith.select %170, %150, %195 : vector<16x16xi1>, vector<16x16xf32>
    %197 = arith.select %172, %152, %196 : vector<16x16xi1>, vector<16x16xf32>
    %cst_74 = arith.constant 0.000000e+00 : f32
    %198 = vector.broadcast %cst_74 : f32 to vector<16x16xf32>
    %199 = arith.select %172, %150, %198 : vector<16x16xi1>, vector<16x16xf32>
    %200 = arith.select %174, %152, %199 : vector<16x16xi1>, vector<16x16xf32>
    %cst_75 = arith.constant 0.000000e+00 : f32
    %201 = vector.broadcast %cst_75 : f32 to vector<16x16xf32>
    %202 = arith.select %174, %150, %201 : vector<16x16xi1>, vector<16x16xf32>
    %203 = arith.select %176, %152, %202 : vector<16x16xi1>, vector<16x16xf32>
    %cst_76 = arith.constant 0.000000e+00 : f32
    %204 = vector.broadcast %cst_76 : f32 to vector<16x16xf32>
    %205 = arith.select %176, %150, %204 : vector<16x16xi1>, vector<16x16xf32>
    %206 = arith.select %178, %152, %205 : vector<16x16xi1>, vector<16x16xf32>
    %cst_77 = arith.constant 0.000000e+00 : f32
    %207 = vector.broadcast %cst_77 : f32 to vector<16x16xf32>
    %208 = arith.select %178, %150, %207 : vector<16x16xi1>, vector<16x16xf32>
    %209 = arith.select %180, %152, %208 : vector<16x16xi1>, vector<16x16xf32>
    %cst_78 = arith.constant 0.000000e+00 : f32
    %210 = vector.broadcast %cst_78 : f32 to vector<16x16xf32>
    %211 = arith.select %180, %150, %210 : vector<16x16xi1>, vector<16x16xf32>
    %212 = arith.select %182, %152, %211 : vector<16x16xi1>, vector<16x16xf32>
    %213 = tpu.concatenate %185, %188, %191, %194, %197, %200, %203, %206, %209, %212 in 1 : vector<16x16xf32>, vector<16x16xf32>, vector<16x16xf32>, vector<16x16xf32>, vector<16x16xf32>, vector<16x16xf32>, vector<16x16xf32>, vector<16x16xf32>, vector<16x16xf32>, vector<16x16xf32> -> vector<16x160xf32>
    %c0_79 = arith.constant 0 : index
    %c0_80 = arith.constant 0 : index
    %214 = vector.load %arg6[%c0_79, %c0_80] : memref<2x16xf32, #tpu.memory_space<vmem>>, vector<2x16xf32>
    %cst_81 = arith.constant dense<0.000000e+00> : vector<2x160xf32>
    %215 = tpu.matmul %214, %213, %cst_81 {dimension_numbers = #tpu.dot_dimension_numbers<[1], [0], [0], [1], [0, 0, 1, 1], [], []>} : vector<2x16xf32>, vector<16x160xf32>, vector<2x160xf32> -> vector<2x160xf32>
    %c0_82 = arith.constant 0 : index
    %c0_83 = arith.constant 0 : index
    %216 = vector.load %arg7[%c0_82, %c0_83] : memref<16x2xf32, #tpu.memory_space<vmem>>, vector<16x2xf32>
    %217 = vector.extract_strided_slice %215 {offsets = [0, 0], sizes = [2, 16], strides = [1, 1]} : vector<2x160xf32> to vector<2x16xf32>
    %cst_84 = arith.constant dense<0.000000e+00> : vector<2x2xf32>
    %218 = tpu.matmul %217, %216, %cst_84 {dimension_numbers = #tpu.dot_dimension_numbers<[1], [0], [0], [1], [0, 0, 1, 1], [], []>} : vector<2x16xf32>, vector<16x2xf32>, vector<2x2xf32> -> vector<2x2xf32>
    %219 = arith.mulf %218, %218 : vector<2x2xf32>
    %220 = vector.extract_strided_slice %215 {offsets = [0, 16], sizes = [2, 16], strides = [1, 1]} : vector<2x160xf32> to vector<2x16xf32>
    %cst_85 = arith.constant dense<0.000000e+00> : vector<2x2xf32>
    %221 = tpu.matmul %220, %216, %cst_85 {dimension_numbers = #tpu.dot_dimension_numbers<[1], [0], [0], [1], [0, 0, 1, 1], [], []>} : vector<2x16xf32>, vector<16x2xf32>, vector<2x2xf32> -> vector<2x2xf32>
    %222 = arith.mulf %221, %221 : vector<2x2xf32>
    %223 = arith.addf %219, %222 : vector<2x2xf32>
    %224 = vector.extract_strided_slice %215 {offsets = [0, 32], sizes = [2, 16], strides = [1, 1]} : vector<2x160xf32> to vector<2x16xf32>
    %cst_86 = arith.constant dense<0.000000e+00> : vector<2x2xf32>
    %225 = tpu.matmul %224, %216, %cst_86 {dimension_numbers = #tpu.dot_dimension_numbers<[1], [0], [0], [1], [0, 0, 1, 1], [], []>} : vector<2x16xf32>, vector<16x2xf32>, vector<2x2xf32> -> vector<2x2xf32>
    %226 = arith.mulf %225, %225 : vector<2x2xf32>
    %227 = arith.addf %223, %226 : vector<2x2xf32>
    %228 = vector.extract_strided_slice %215 {offsets = [0, 48], sizes = [2, 16], strides = [1, 1]} : vector<2x160xf32> to vector<2x16xf32>
    %cst_87 = arith.constant dense<0.000000e+00> : vector<2x2xf32>
    %229 = tpu.matmul %228, %216, %cst_87 {dimension_numbers = #tpu.dot_dimension_numbers<[1], [0], [0], [1], [0, 0, 1, 1], [], []>} : vector<2x16xf32>, vector<16x2xf32>, vector<2x2xf32> -> vector<2x2xf32>
    %230 = arith.mulf %229, %229 : vector<2x2xf32>
    %231 = arith.addf %227, %230 : vector<2x2xf32>
    %232 = vector.extract_strided_slice %215 {offsets = [0, 64], sizes = [2, 16], strides = [1, 1]} : vector<2x160xf32> to vector<2x16xf32>
    %cst_88 = arith.constant dense<0.000000e+00> : vector<2x2xf32>
    %233 = tpu.matmul %232, %216, %cst_88 {dimension_numbers = #tpu.dot_dimension_numbers<[1], [0], [0], [1], [0, 0, 1, 1], [], []>} : vector<2x16xf32>, vector<16x2xf32>, vector<2x2xf32> -> vector<2x2xf32>
    %234 = arith.mulf %233, %233 : vector<2x2xf32>
    %235 = arith.addf %231, %234 : vector<2x2xf32>
    %236 = vector.extract_strided_slice %215 {offsets = [0, 80], sizes = [2, 16], strides = [1, 1]} : vector<2x160xf32> to vector<2x16xf32>
    %cst_89 = arith.constant dense<0.000000e+00> : vector<2x2xf32>
    %237 = tpu.matmul %236, %216, %cst_89 {dimension_numbers = #tpu.dot_dimension_numbers<[1], [0], [0], [1], [0, 0, 1, 1], [], []>} : vector<2x16xf32>, vector<16x2xf32>, vector<2x2xf32> -> vector<2x2xf32>
    %238 = arith.mulf %237, %237 : vector<2x2xf32>
    %239 = arith.addf %235, %238 : vector<2x2xf32>
    %240 = vector.extract_strided_slice %215 {offsets = [0, 96], sizes = [2, 16], strides = [1, 1]} : vector<2x160xf32> to vector<2x16xf32>
    %cst_90 = arith.constant dense<0.000000e+00> : vector<2x2xf32>
    %241 = tpu.matmul %240, %216, %cst_90 {dimension_numbers = #tpu.dot_dimension_numbers<[1], [0], [0], [1], [0, 0, 1, 1], [], []>} : vector<2x16xf32>, vector<16x2xf32>, vector<2x2xf32> -> vector<2x2xf32>
    %242 = arith.mulf %241, %241 : vector<2x2xf32>
    %243 = arith.addf %239, %242 : vector<2x2xf32>
    %244 = vector.extract_strided_slice %215 {offsets = [0, 112], sizes = [2, 16], strides = [1, 1]} : vector<2x160xf32> to vector<2x16xf32>
    %cst_91 = arith.constant dense<0.000000e+00> : vector<2x2xf32>
    %245 = tpu.matmul %244, %216, %cst_91 {dimension_numbers = #tpu.dot_dimension_numbers<[1], [0], [0], [1], [0, 0, 1, 1], [], []>} : vector<2x16xf32>, vector<16x2xf32>, vector<2x2xf32> -> vector<2x2xf32>
    %246 = arith.mulf %245, %245 : vector<2x2xf32>
    %247 = arith.addf %243, %246 : vector<2x2xf32>
    %248 = vector.extract_strided_slice %215 {offsets = [0, 128], sizes = [2, 16], strides = [1, 1]} : vector<2x160xf32> to vector<2x16xf32>
    %cst_92 = arith.constant dense<0.000000e+00> : vector<2x2xf32>
    %249 = tpu.matmul %248, %216, %cst_92 {dimension_numbers = #tpu.dot_dimension_numbers<[1], [0], [0], [1], [0, 0, 1, 1], [], []>} : vector<2x16xf32>, vector<16x2xf32>, vector<2x2xf32> -> vector<2x2xf32>
    %250 = arith.mulf %249, %249 : vector<2x2xf32>
    %251 = arith.addf %247, %250 : vector<2x2xf32>
    %252 = vector.extract_strided_slice %215 {offsets = [0, 144], sizes = [2, 16], strides = [1, 1]} : vector<2x160xf32> to vector<2x16xf32>
    %cst_93 = arith.constant dense<0.000000e+00> : vector<2x2xf32>
    %253 = tpu.matmul %252, %216, %cst_93 {dimension_numbers = #tpu.dot_dimension_numbers<[1], [0], [0], [1], [0, 0, 1, 1], [], []>} : vector<2x16xf32>, vector<16x2xf32>, vector<2x2xf32> -> vector<2x2xf32>
    %254 = arith.mulf %253, %253 : vector<2x2xf32>
    %255 = arith.addf %251, %254 : vector<2x2xf32>
    %c0_94 = arith.constant 0 : index
    %c0_95 = arith.constant 0 : index
    %256 = vector.load %arg8[%c0_94, %c0_95] : memref<2x2xf32, #tpu.memory_space<vmem>>, vector<2x2xf32>
    %cst_96 = arith.constant dense<0.000000e+00> : vector<2x2xf32>
    %257 = tpu.matmul %256, %255, %cst_96 {dimension_numbers = #tpu.dot_dimension_numbers<[1], [0], [0], [1], [0, 0, 1, 1], [], []>} : vector<2x2xf32>, vector<2x2xf32>, vector<2x2xf32> -> vector<2x2xf32>
    %c0_97 = arith.constant 0 : index
    %c0_98 = arith.constant 0 : index
    %258 = vector.load %arg9[%c0_97, %c0_98] : memref<2x2xf32, #tpu.memory_space<vmem>>, vector<2x2xf32>
    %cst_99 = arith.constant dense<0.000000e+00> : vector<2x2xf32>
    %259 = tpu.matmul %257, %258, %cst_99 {dimension_numbers = #tpu.dot_dimension_numbers<[1], [0], [0], [1], [0, 0, 1, 1], [], []>} : vector<2x2xf32>, vector<2x2xf32>, vector<2x2xf32> -> vector<2x2xf32>
    %cst_100 = arith.constant 1.000000e-10 : f32
    %260 = vector.broadcast %cst_100 : f32 to vector<2x2xf32>
    %261 = arith.addf %259, %260 : vector<2x2xf32>
    %262 = math.rsqrt %261 : vector<2x2xf32>
    %263 = tpu.concatenate %218, %221, %225, %229, %233, %237, %241, %245, %249, %253 in 1 : vector<2x2xf32>, vector<2x2xf32>, vector<2x2xf32>, vector<2x2xf32>, vector<2x2xf32>, vector<2x2xf32>, vector<2x2xf32>, vector<2x2xf32>, vector<2x2xf32>, vector<2x2xf32> -> vector<2x20xf32>
    %264 = tpu.concatenate %262, %262, %262, %262, %262, %262, %262, %262, %262, %262 in 1 : vector<2x2xf32>, vector<2x2xf32>, vector<2x2xf32>, vector<2x2xf32>, vector<2x2xf32>, vector<2x2xf32>, vector<2x2xf32>, vector<2x2xf32>, vector<2x2xf32>, vector<2x2xf32> -> vector<2x20xf32>
    %265 = arith.mulf %263, %264 : vector<2x20xf32>
    %c0_101 = arith.constant 0 : index
    %c0_102 = arith.constant 0 : index
    %c0_103 = arith.constant 0 : index
    %266 = vector.load %arg10[%c0_101, %c0_102, %c0_103] : memref<1x2x20xf32, #tpu.memory_space<vmem>>, vector<1x2x20xf32>
    %267 = vector.shape_cast %266 : vector<1x2x20xf32> to vector<2x20xf32>
    %268 = vector.shape_cast %265 : vector<2x20xf32> to vector<1x2x20xf32>
    tpu.vector_store %arg10[%c0_101, %c0_102, %c0_103], %268 {strides = array<i32>} : memref<1x2x20xf32, #tpu.memory_space<vmem>>, vector<1x2x20xf32>,
    return
  }
  func.func @transform_0(%arg0: i32, %arg1: i32) -> (i32, i32, i32, i32) {
    %c0_i32 = arith.constant 0 : i32
    %c0_i32_0 = arith.constant 0 : i32
    %c0_i32_1 = arith.constant 0 : i32
    return %arg0, %c0_i32, %arg1, %c0_i32_0 : i32, i32, i32, i32
  }
  func.func @transform_1(%arg0: i32, %arg1: i32) -> (i32, i32, i32, i32) {
    %c2_i32 = arith.constant 2 : i32
    %0 = arith.muli %arg1, %c2_i32 : i32
    %c1_i32 = arith.constant 1 : i32
    %1 = arith.subi %0, %c1_i32 : i32
    %c0_i32 = arith.constant 0 : i32
    %2 = arith.maxsi %1, %c0_i32 : i32
    %c0_i32_0 = arith.constant 0 : i32
    %c0_i32_1 = arith.constant 0 : i32
    %c0_i32_2 = arith.constant 0 : i32
    return %arg0, %c0_i32_0, %2, %c0_i32_1 : i32, i32, i32, i32
  }
  func.func @transform_2(%arg0: i32, %arg1: i32) -> (i32, i32, i32, i32) {
    %c1_i32 = arith.constant 1 : i32
    %0 = arith.addi %arg1, %c1_i32 : i32
    %c2_i32 = arith.constant 2 : i32
    %1 = arith.muli %0, %c2_i32 : i32
    %c1_i32_0 = arith.constant 1 : i32
    %2 = arith.minsi %1, %c1_i32_0 : i32
    %c0_i32 = arith.constant 0 : i32
    %c0_i32_1 = arith.constant 0 : i32
    %c0_i32_2 = arith.constant 0 : i32
    return %arg0, %c0_i32, %2, %c0_i32_1 : i32, i32, i32, i32
  }
  func.func @transform_3(%arg0: i32, %arg1: i32) -> i32 {
    %c0_i32 = arith.constant 0 : i32
    %c0_i32_0 = arith.constant 0 : i32
    return %c0_i32 : i32
  }
  func.func @transform_4(%arg0: i32, %arg1: i32) -> (i32, i32) {
    %c0_i32 = arith.constant 0 : i32
    %c0_i32_0 = arith.constant 0 : i32
    %c0_i32_1 = arith.constant 0 : i32
    return %c0_i32, %c0_i32_0 : i32, i32
  }
  func.func @transform_5(%arg0: i32, %arg1: i32) -> (i32, i32) {
    %c0_i32 = arith.constant 0 : i32
    %c0_i32_0 = arith.constant 0 : i32
    %c0_i32_1 = arith.constant 0 : i32
    return %c0_i32, %c0_i32_0 : i32, i32
  }
  func.func @transform_6(%arg0: i32, %arg1: i32) -> (i32, i32) {
    %c0_i32 = arith.constant 0 : i32
    %c0_i32_0 = arith.constant 0 : i32
    %c0_i32_1 = arith.constant 0 : i32
    return %c0_i32, %c0_i32_0 : i32, i32
  }
  func.func @transform_7(%arg0: i32, %arg1: i32) -> (i32, i32) {
    %c0_i32 = arith.constant 0 : i32
    %c0_i32_0 = arith.constant 0 : i32
    %c0_i32_1 = arith.constant 0 : i32
    return %c0_i32, %c0_i32_0 : i32, i32
  }
  func.func @transform_8(%arg0: i32, %arg1: i32) -> (i32, i32, i32) {
    %c0_i32 = arith.constant 0 : i32
    %c0_i32_0 = arith.constant 0 : i32
    return %arg0, %arg1, %c0_i32 : i32, i32, i32
  }
}

</mosaic_0001>

<llo_original>
// kernel: tpu_custom_call.1
$region0: #{tpu_custom_call.1}
  #allocation0 [shape = 'u32[]', space=smem, size = 0x4, offset = 0x4, fixed_abs, tag = 'smem constant byte address 0x4 - core index']
  #allocation1 [shape = 'u32[144,128]{1,0:T(1,128)}', space=vmem, size = 0x12000, scoped, tag = 'internal scratch']
  %s0 = inlined_call_operand.hbm [shape: f32[2,4,16,16], index: 0, kind: input, shape index: {}]
  %s1 = inlined_call_operand.hbm [shape: f32[2,4,16,16], index: 1, kind: input, shape index: {}]
  %s2 = inlined_call_operand.hbm [shape: f32[2,4,16,16], index: 2, kind: input, shape index: {}]
  %s3 = inlined_call_operand.vmem [shape: f32[2], index: 3, kind: input, shape index: {}]
  %s4 = inlined_call_operand.vmem [shape: f32[2,16], index: 4, kind: input, shape index: {}]
  %s5 = inlined_call_operand.vmem [shape: f32[16,2], index: 5, kind: input, shape index: {}]
  %s6 = inlined_call_operand.vmem [shape: f32[2,2], index: 6, kind: input, shape index: {}]
  %s7 = inlined_call_operand.vmem [shape: f32[2,2], index: 7, kind: input, shape index: {}]
  %s8 = inlined_call_operand.hbm [shape: f32[2,2,20], index: 8, kind: output, shape index: {}]
  %s9 = sld [smem:[#allocation0]]
  $region81: #{tpu_custom_call.1} parent=0
    _
  %s11 = ssub.s32 1, %s9
  %s12 = scalar_select 0, %s11, %s9
  $region1: #{tpu_custom_call.1} parent=0
    #allocation2 [shape = 'u8[65536]{0}', space=vmem, size = 0x10000, scoped, tag = 'input window, operand 0']
    #allocation3 [shape = 's32[2]{0}', space=sflag, size = 0x8, scoped, tag = 'scoped memory for tpu_custom_call.1']
    #allocation4 [shape = 's32[2]{0}', space=sflag, size = 0x8, scoped, tag = 'scoped memory for tpu_custom_call.1']
    #allocation5 [shape = 's32[2]{0}', space=sflag, size = 0x8, scoped, tag = 'scoped memory for tpu_custom_call.1']
    #allocation6 [shape = 'u8[32768]{0}', space=vmem, size = 0x8000, scoped, tag = 'input window, operand 1']
    #allocation7 [shape = 's32[2]{0}', space=sflag, size = 0x8, scoped, tag = 'scoped memory for tpu_custom_call.1']
    #allocation8 [shape = 'u8[32768]{0}', space=vmem, size = 0x8000, scoped, tag = 'input window, operand 2']
    #allocation9 [shape = 'u8[512]{0}', space=smem, size = 0x200, scoped, tag = 'input window, operand 3, single buffered']
    #allocation10 [shape = 'u8[2048]{0}', space=vmem, size = 0x800, scoped, tag = 'output window, operand 0']
    %13 = vsyncpa [#allocation3], 0
    %s14 = scalar_lea.sflag [#allocation3], 1
    %15 = vsyncpa %s14, 0
    %16 = vsyncpa [#allocation7], 0
    %s17 = scalar_lea.sflag [#allocation7], 1
    %18 = vsyncpa %s17, 0
    %19 = vsyncpa [#allocation5], 0
    %20 = vsyncpa [#allocation4], 0
    %s21 = scalar_lea.sflag [#allocation4], 1
    %22 = vsyncpa %s21, 0
    loop: start=0, step=1, limit=4
    $region2: #{tpu_custom_call.1} parent=1 // loop_pre_header
      _
    $region3: #{tpu_custom_call.1} parent=1 // loop_header
      %s24 = sphi 0, %s28
      %p25 = scmp.ge.s32.totalorder %s24, 4
      %s31 = sphi 0, %s43
      %s32 = sphi 0, %s39
      %s33 = sphi 0, %s31
      %s34 = sphi 0, %s32
      %s35 = sphi 0, %s33
      %s36 = sphi 0, %s34
      %s48 = sphi 0, %s50
      %s51 = sphi 0, %s48
      %s52 = sphi 0, %s51
      %s68 = sphi 0, %s52
      %s84 = sphi 0, %s86
      %s87 = sphi 0, %s84
      %s88 = sphi 0, %s87
      %s104 = sphi 0, %s88
      %s120 = sphi 0, %s122
      %s123 = sphi 0, %s120
      %s124 = sphi 0, %s123
      %s140 = sphi 0, %s124
      %s144 = sphi 0, %s144
      %s146 = sphi 0, %s144
      %s147 = sphi 0, %s146
      %s161 = sphi 0, %s147
      %s165 = sphi 0, %s165
      %s167 = sphi 0, %s165
      %s168 = sphi 0, %s167
      %s182 = sphi 0, %s168
      %s186 = sphi 0, %s186
      %s188 = sphi 0, %s186
      %s189 = sphi 0, %s188
      %s203 = sphi 0, %s189
      %s207 = sphi 0, %s207
      %s209 = sphi 0, %s207
      %s210 = sphi 0, %s209
      %s224 = sphi 0, %s210
      %s228 = sphi 0, %s228
      %s230 = sphi 0, %s228
      %s231 = sphi 0, %s230
      %s245 = sphi 0, %s231
      %s253 = sphi 0, %s255
      %s256 = sphi 0, %s253
      %s257 = sphi 0, %s256
      %s273 = sphi 0, %s257
    $region4: #{tpu_custom_call.1} parent=1 // loop_header_branch
      %27 = sbr.rel (%p25) target = $region8
    $region5: #{tpu_custom_call.1} parent=1 // loop_body
      %s29 = ssub.s32 %s24, 1
      %s30 = ssub.s32 %s24, 2
      %s37 = sadd.s32 1, %s32
      %p38 = scmp.ge.s32.totalorder %s37, 1
      %s39 = scalar_select %p38, 0, %s37
      %s40 = sadd.s32 1, %s31
      %s41 = scalar_select %p38, %s40, %s31
      %p42 = scmp.ge.s32.totalorder %s41, 2
      %s43 = scalar_select %p42, 0, %s41
      %s44 = ssub.s32 %s31, %s43
      %s45 = ssub.s32 %s32, %s39
      %s46 = sor.u32 %s44, %s45
      %p47 = scmp.eq.s32.totalorder %s46, 0
      %s49 = sadd.s32 %s48, 1
      %s50 = scalar_select %p47, %s48, %s49
      %p53 = pneg %p47
      %p54 = scmp.eq.s32.totalorder %s24, 1
      %p55 = por %p53, %p54
      %p56 = scmp.ne.s32.totalorder %s48, %s51
      %p57 = scmp.eq.s32.totalorder %s24, 0
      %p58 = por %p56, %p57
      %p59 = scmp.ne.s32.totalorder %s48, %s51
      %p60 = scmp.eq.s32.totalorder %s29, 1
      %p61 = por %p59, %p60
      %p62 = scmp.ne.s32.totalorder %s51, %s52
      %p63 = scmp.eq.s32.totalorder %s29, 0
      %p64 = por %p62, %p63
      %p65 = scmp.ne.s32.totalorder %s51, %s52
      %p66 = scmp.eq.s32.totalorder %s30, 1
      %p67 = por %p65, %p66
      %p69 = scmp.ne.s32.totalorder %s52, %s68
      %p70 = scmp.eq.s32.totalorder %s30, 0
      %p71 = por %p69, %p70
      %s72 = smul.u32 %s32, 2
      %s73 = ssub.s32 %s72, 1
      %p74 = scmp.gt.s32.totalorder %s73, 0
      %s75 = scalar_select %p74, %s73, 0
      %s76 = smul.u32 %s39, 2
      %s77 = ssub.s32 %s76, 1
      %p78 = scmp.gt.s32.totalorder %s77, 0
      %s79 = scalar_select %p78, %s77, 0
      %s80 = ssub.s32 %s31, %s43
      %s81 = ssub.s32 %s75, %s79
      %s82 = sor.u32 %s80, %s81
      %p83 = scmp.eq.s32.totalorder %s82, 0
      %s85 = sadd.s32 %s84, 1
      %s86 = scalar_select %p83, %s84, %s85
      %p89 = pneg %p83
      %p90 = scmp.eq.s32.totalorder %s24, 1
      %p91 = por %p89, %p90
      %p92 = scmp.ne.s32.totalorder %s84, %s87
      %p93 = scmp.eq.s32.totalorder %s24, 0
      %p94 = por %p92, %p93
      %p95 = scmp.ne.s32.totalorder %s84, %s87
      %p96 = scmp.eq.s32.totalorder %s29, 1
      %p97 = por %p95, %p96
      %p98 = scmp.ne.s32.totalorder %s87, %s88
      %p99 = scmp.eq.s32.totalorder %s29, 0
      %p100 = por %p98, %p99
      %p101 = scmp.ne.s32.totalorder %s87, %s88
      %p102 = scmp.eq.s32.totalorder %s30, 1
      %p103 = por %p101, %p102
      %p105 = scmp.ne.s32.totalorder %s88, %s104
      %p106 = scmp.eq.s32.totalorder %s30, 0
      %p107 = por %p105, %p106
      %s108 = sadd.s32 %s32, 1
      %s109 = smul.u32 %s108, 2
      %p110 = scmp.lt.s32.totalorder %s109, 1
      %s111 = scalar_select %p110, %s109, 1
      %s112 = sadd.s32 %s39, 1
      %s113 = smul.u32 %s112, 2
      %p114 = scmp.lt.s32.totalorder %s113, 1
      %s115 = scalar_select %p114, %s113, 1
      %s116 = ssub.s32 %s31, %s43
      %s117 = ssub.s32 %s111, %s115
      %s118 = sor.u32 %s116, %s117
      %p119 = scmp.eq.s32.totalorder %s118, 0
      %s121 = sadd.s32 %s120, 1
      %s122 = scalar_select %p119, %s120, %s121
      %p125 = pneg %p119
      %p126 = scmp.eq.s32.totalorder %s24, 1
      %p127 = por %p125, %p126
      %p128 = scmp.ne.s32.totalorder %s120, %s123
      %p129 = scmp.eq.s32.totalorder %s24, 0
      %p130 = por %p128, %p129
      %p131 = scmp.ne.s32.totalorder %s120, %s123
      %p132 = scmp.eq.s32.totalorder %s29, 1
      %p133 = por %p131, %p132
      %p134 = scmp.ne.s32.totalorder %s123, %s124
      %p135 = scmp.eq.s32.totalorder %s29, 0
      %p136 = por %p134, %p135
      %p137 = scmp.ne.s32.totalorder %s123, %s124
      %p138 = scmp.eq.s32.totalorder %s30, 1
      %p139 = por %p137, %p138
      %p141 = scmp.ne.s32.totalorder %s124, %s140
      %p142 = scmp.eq.s32.totalorder %s30, 0
      %p143 = por %p141, %p142
      %s145 = sadd.s32 %s144, 1
      %p148 = scmp.eq.s32.totalorder %s24, 1
      %p149 = scmp.ne.s32.totalorder %s144, %s146
      %p150 = scmp.eq.s32.totalorder %s24, 0
      %p151 = por %p149, %p150
      %p152 = scmp.ne.s32.totalorder %s144, %s146
      %p153 = scmp.eq.s32.totalorder %s29, 1
      %p154 = por %p152, %p153
      %p155 = scmp.ne.s32.totalorder %s146, %s147
      %p156 = scmp.eq.s32.totalorder %s29, 0
      %p157 = por %p155, %p156
      %p158 = scmp.ne.s32.totalorder %s146, %s147
      %p159 = scmp.eq.s32.totalorder %s30, 1
      %p160 = por %p158, %p159
      %p162 = scmp.ne.s32.totalorder %s147, %s161
      %p163 = scmp.eq.s32.totalorder %s30, 0
      %p164 = por %p162, %p163
      %s166 = sadd.s32 %s165, 1
      %p169 = scmp.eq.s32.totalorder %s24, 1
      %p170 = scmp.ne.s32.totalorder %s165, %s167
      %p171 = scmp.eq.s32.totalorder %s24, 0
      %p172 = por %p170, %p171
      %p173 = scmp.ne.s32.totalorder %s165, %s167
      %p174 = scmp.eq.s32.totalorder %s29, 1
      %p175 = por %p173, %p174
      %p176 = scmp.ne.s32.totalorder %s167, %s168
      %p177 = scmp.eq.s32.totalorder %s29, 0
      %p178 = por %p176, %p177
      %p179 = scmp.ne.s32.totalorder %s167, %s168
      %p180 = scmp.eq.s32.totalorder %s30, 1
      %p181 = por %p179, %p180
      %p183 = scmp.ne.s32.totalorder %s168, %s182
      %p184 = scmp.eq.s32.totalorder %s30, 0
      %p185 = por %p183, %p184
      %s187 = sadd.s32 %s186, 1
      %p190 = scmp.eq.s32.totalorder %s24, 1
      %p191 = scmp.ne.s32.totalorder %s186, %s188
      %p192 = scmp.eq.s32.totalorder %s24, 0
      %p193 = por %p191, %p192
      %p194 = scmp.ne.s32.totalorder %s186, %s188
      %p195 = scmp.eq.s32.totalorder %s29, 1
      %p196 = por %p194, %p195
      %p197 = scmp.ne.s32.totalorder %s188, %s189
      %p198 = scmp.eq.s32.totalorder %s29, 0
      %p199 = por %p197, %p198
      %p200 = scmp.ne.s32.totalorder %s188, %s189
      %p201 = scmp.eq.s32.totalorder %s30, 1
      %p202 = por %p200, %p201
      %p204 = scmp.ne.s32.totalorder %s189, %s203
      %p205 = scmp.eq.s32.totalorder %s30, 0
      %p206 = por %p204, %p205
      %s208 = sadd.s32 %s207, 1
      %p211 = scmp.eq.s32.totalorder %s24, 1
      %p212 = scmp.ne.s32.totalorder %s207, %s209
      %p213 = scmp.eq.s32.totalorder %s24, 0
      %p214 = por %p212, %p213
      %p215 = scmp.ne.s32.totalorder %s207, %s209
      %p216 = scmp.eq.s32.totalorder %s29, 1
      %p217 = por %p215, %p216
      %p218 = scmp.ne.s32.totalorder %s209, %s210
      %p219 = scmp.eq.s32.totalorder %s29, 0
      %p220 = por %p218, %p219
      %p221 = scmp.ne.s32.totalorder %s209, %s210
      %p222 = scmp.eq.s32.totalorder %s30, 1
      %p223 = por %p221, %p222
      %p225 = scmp.ne.s32.totalorder %s210, %s224
      %p226 = scmp.eq.s32.totalorder %s30, 0
      %p227 = por %p225, %p226
      %s229 = sadd.s32 %s228, 1
      %p232 = scmp.eq.s32.totalorder %s24, 1
      %p233 = scmp.ne.s32.totalorder %s228, %s230
      %p234 = scmp.eq.s32.totalorder %s24, 0
      %p235 = por %p233, %p234
      %p236 = scmp.ne.s32.totalorder %s228, %s230
      %p237 = scmp.eq.s32.totalorder %s29, 1
      %p238 = por %p236, %p237
      %p239 = scmp.ne.s32.totalorder %s230, %s231
      %p240 = scmp.eq.s32.totalorder %s29, 0
      %p241 = por %p239, %p240
      %p242 = scmp.ne.s32.totalorder %s230, %s231
      %p243 = scmp.eq.s32.totalorder %s30, 1
      %p244 = por %p242, %p243
      %p246 = scmp.ne.s32.totalorder %s231, %s245
      %p247 = scmp.eq.s32.totalorder %s30, 0
      %p248 = por %p246, %p247
      %s249 = ssub.s32 %s31, %s43
      %s250 = ssub.s32 %s32, %s39
      %s251 = sor.u32 %s249, %s250
      %p252 = scmp.eq.s32.totalorder %s251, 0
      %s254 = sadd.s32 %s253, 1
      %s255 = scalar_select %p252, %s253, %s254
      %p258 = pneg %p252
      %p259 = scmp.eq.s32.totalorder %s24, 1
      %p260 = por %p258, %p259
      %p261 = scmp.ne.s32.totalorder %s253, %s256
      %p262 = scmp.eq.s32.totalorder %s24, 0
      %p263 = por %p261, %p262
      %p264 = scmp.ne.s32.totalorder %s253, %s256
      %p265 = scmp.eq.s32.totalorder %s29, 1
      %p266 = por %p264, %p265
      %p267 = scmp.ne.s32.totalorder %s256, %s257
      %p268 = scmp.eq.s32.totalorder %s29, 0
      %p269 = por %p267, %p268
      %p270 = scmp.ne.s32.totalorder %s256, %s257
      %p271 = scmp.eq.s32.totalorder %s30, 1
      %p272 = por %p270, %p271
      %p274 = scmp.ne.s32.totalorder %s257, %s273
      %p275 = scmp.eq.s32.totalorder %s30, 0
      %p276 = por %p274, %p275
      %p277 = scmp.le.s32.totalorder 1, %s24
      %p278 = scmp.lt.s32.totalorder %s24, 3
      %p279 = pnand %p277, %p278
      %p280 = pneg %p279
      // Predicated region
      $region9: #{tpu_custom_call.1} parent=5 // pred_check
        _
      $region10: #{tpu_custom_call.1} parent=5 // pred_check_branch
        %282 = sbr.rel (%p279) target = $region12
      $region11: #{tpu_custom_call.1} parent=5 // pred_region
        %s283 = ssub.s32 %s24, 1
        // Predicated region
        $region13: #{tpu_custom_call.1} parent=11 // pred_check
          %p284 = pneg %p157
        $region14: #{tpu_custom_call.1} parent=11 // pred_check_branch
          %286 = sbr.rel (%p284) target = $region16
        $region15: #{tpu_custom_call.1} parent=11 // pred_region
          %s288 = ssub.s32 16, 16
          %289 = vsyncadd [#allocation5], %s288
          %s291 = sshll.u32 %s3, 4
          %s292 = int_to_ptr.vmem [resolvable:$true] %s291
          %294 = dma.vmem_to_smem %s292, 16, [#allocation9], [#allocation5]
        $region16: #{tpu_custom_call.1} parent=11 // pred_fallthru
          _
        // Predicated region
        $region17: #{tpu_custom_call.1} parent=11 // pred_check
          %p295 = pneg %p178
        $region18: #{tpu_custom_call.1} parent=11 // pred_check_branch
          %297 = sbr.rel (%p295) target = $region20
        $region19: #{tpu_custom_call.1} parent=11 // pred_region
          _
        $region20: #{tpu_custom_call.1} parent=11 // pred_fallthru
          _
        // Predicated region
        $region21: #{tpu_custom_call.1} parent=11 // pred_check
          %p298 = pneg %p199
        $region22: #{tpu_custom_call.1} parent=11 // pred_check_branch
          %300 = sbr.rel (%p298) target = $region24
        $region23: #{tpu_custom_call.1} parent=11 // pred_region
          _
        $region24: #{tpu_custom_call.1} parent=11 // pred_fallthru
          _
        // Predicated region
        $region25: #{tpu_custom_call.1} parent=11 // pred_check
          %p301 = pneg %p220
        $region26: #{tpu_custom_call.1} parent=11 // pred_check_branch
          %303 = sbr.rel (%p301) target = $region28
        $region27: #{tpu_custom_call.1} parent=11 // pred_region
          _
        $region28: #{tpu_custom_call.1} parent=11 // pred_fallthru
          _
        // Predicated region
        $region29: #{tpu_custom_call.1} parent=11 // pred_check
          %p304 = pneg %p241
        $region30: #{tpu_custom_call.1} parent=11 // pred_check_branch
          %306 = sbr.rel (%p304) target = $region32
        $region31: #{tpu_custom_call.1} parent=11 // pred_region
          _
        $region32: #{tpu_custom_call.1} parent=11 // pred_fallthru
          _
      $region12: #{tpu_custom_call.1} parent=5 // pred_fallthru
        _
      %p307 = scmp.lt.s32.totalorder %s24, 2
      // Predicated region
      $region33: #{tpu_custom_call.1} parent=5 // pred_check
        %p308 = pneg %p307
      $region34: #{tpu_custom_call.1} parent=5 // pred_check_branch
        %310 = sbr.rel (%p308) target = $region36
      $region35: #{tpu_custom_call.1} parent=5 // pred_region
        // Predicated region
        $region37: #{tpu_custom_call.1} parent=35 // pred_check
          %p311 = pneg %p58
        $region38: #{tpu_custom_call.1} parent=35 // pred_check_branch
          %313 = sbr.rel (%p311) target = $region40
        $region39: #{tpu_custom_call.1} parent=35 // pred_region
          %s314 = sand.u32 %s48, 1
          %s315 = scalar_lea.sflag [#allocation3], %s314
          %s316 = sand.u32 %s48, 1
          %s317 = smul.addr %s316, 64
          %s318 = scalar_lea.vmem [#allocation2], %s317
          %s319 = smul.u32 2, %s32
          %s321 = ssub.s32 1024, 1024
          %322 = vsyncadd %s315, %s321
          %s323 = smul.addr %s31, 8
          %s324 = sadd.s32 %s319, %s323
          %s325 = smul.addr %s324, 128
          %s326 = scalar_lea.hbm %s0, %s325
          %s327 = sshll.u32 %s318, 4
          %s328 = int_to_ptr.vmem [resolvable:$true] %s327
          %333 = dma.hbm_to_vmem [thread:$0]  %s326, 1024, %s328, %s315, 128, 128, 8
        $region40: #{tpu_custom_call.1} parent=35 // pred_fallthru
          _
        // Predicated region
        $region41: #{tpu_custom_call.1} parent=35 // pred_check
          %p334 = pneg %p94
        $region42: #{tpu_custom_call.1} parent=35 // pred_check_branch
          %336 = sbr.rel (%p334) target = $region44
        $region43: #{tpu_custom_call.1} parent=35 // pred_region
          %s337 = sand.u32 %s24, 1
          %s338 = scalar_lea.sflag [#allocation7], %s337
          %s339 = sand.u32 %s84, 1
          %s340 = smul.addr %s339, 32
          %s341 = scalar_lea.vmem [#allocation6], %s340
          %s342 = smul.u32 %s32, 2
          %s343 = ssub.s32 %s342, 1
          %p344 = scmp.gt.s32.totalorder %s343, 0
          %s345 = scalar_select %p344, %s343, 0
          %s347 = ssub.s32 512, 512
          %348 = vsyncadd %s338, %s347
          %s349 = smul.addr %s31, 8
          %s350 = sadd.s32 %s345, %s349
          %s351 = smul.addr %s350, 128
          %s352 = scalar_lea.hbm %s1, %s351
          %s353 = sshll.u32 %s341, 4
          %s354 = int_to_ptr.vmem [resolvable:$true] %s353
          %359 = dma.hbm_to_vmem [thread:$0]  %s352, 512, %s354, %s338, 256, 128, 8
        $region44: #{tpu_custom_call.1} parent=35 // pred_fallthru
          _
        // Predicated region
        $region45: #{tpu_custom_call.1} parent=35 // pred_check
          %p360 = pneg %p130
        $region46: #{tpu_custom_call.1} parent=35 // pred_check_branch
          %362 = sbr.rel (%p360) target = $region48
        $region47: #{tpu_custom_call.1} parent=35 // pred_region
          %s363 = sand.u32 %s24, 1
          %s364 = scalar_lea.sflag [#allocation7], %s363
          %s365 = sand.u32 %s120, 1
          %s366 = smul.addr %s365, 32
          %s367 = scalar_lea.vmem [#allocation8], %s366
          %s368 = sadd.s32 %s32, 1
          %s369 = smul.u32 %s368, 2
          %p370 = scmp.lt.s32.totalorder %s369, 1
          %s371 = scalar_select %p370, %s369, 1
          %s373 = ssub.s32 512, 512
          %374 = vsyncadd %s364, %s373
          %s375 = smul.addr %s31, 8
          %s376 = sadd.s32 %s371, %s375
          %s377 = smul.addr %s376, 128
          %s378 = scalar_lea.hbm %s2, %s377
          %s379 = sshll.u32 %s367, 4
          %s380 = int_to_ptr.vmem [resolvable:$true] %s379
          %385 = dma.hbm_to_vmem [thread:$0]  %s378, 512, %s380, %s364, 256, 128, 8
        $region48: #{tpu_custom_call.1} parent=35 // pred_fallthru
          _
      $region36: #{tpu_custom_call.1} parent=5 // pred_fallthru
        _
      %p386 = scmp.le.s32.totalorder 1, %s24
      %p387 = scmp.lt.s32.totalorder %s24, 3
      %p388 = pnand %p386, %p387
      %p389 = pneg %p388
      // Predicated region
      $region49: #{tpu_custom_call.1} parent=5 // pred_check
        _
      $region50: #{tpu_custom_call.1} parent=5 // pred_check_branch
        %391 = sbr.rel (%p388) target = $region52
      $region51: #{tpu_custom_call.1} parent=5 // pred_region
        %s392 = ssub.s32 %s24, 1
        %s393 = sand.u32 %s51, 1
        %s394 = scalar_lea.sflag [#allocation3], %s393
        %s395 = sand.u32 %s51, 1
        %s396 = smul.addr %s395, 64
        %s397 = scalar_lea.vmem [#allocation2], %s396
        // Predicated region
        $region53: #{tpu_custom_call.1} parent=51 // pred_check
          %p398 = pneg %p64
        $region54: #{tpu_custom_call.1} parent=51 // pred_check_branch
          %400 = sbr.rel (%p398) target = $region56
        $region55: #{tpu_custom_call.1} parent=51 // pred_region
          %401 = dma.done %s394, 1024
        $region56: #{tpu_custom_call.1} parent=51 // pred_fallthru
          _
        %s402 = sand.u32 %s29, 1
        %s403 = scalar_lea.sflag [#allocation7], %s402
        %s404 = sand.u32 %s87, 1
        %s405 = smul.addr %s404, 32
        %s406 = scalar_lea.vmem [#allocation6], %s405
        // Predicated region
        $region57: #{tpu_custom_call.1} parent=51 // pred_check
          %p407 = pneg %p100
        $region58: #{tpu_custom_call.1} parent=51 // pred_check_branch
          %409 = sbr.rel (%p407) target = $region60
        $region59: #{tpu_custom_call.1} parent=51 // pred_region
          %410 = dma.done %s403, 512
        $region60: #{tpu_custom_call.1} parent=51 // pred_fallthru
          _
        %s411 = sand.u32 %s29, 1
        %s412 = scalar_lea.sflag [#allocation7], %s411
        %s413 = sand.u32 %s123, 1
        %s414 = smul.addr %s413, 32
        %s415 = scalar_lea.vmem [#allocation8], %s414
        // Predicated region
        $region61: #{tpu_custom_call.1} parent=51 // pred_check
          %p416 = pneg %p136
        $region62: #{tpu_custom_call.1} parent=51 // pred_check_branch
          %418 = sbr.rel (%p416) target = $region64
        $region63: #{tpu_custom_call.1} parent=51 // pred_region
          %419 = dma.done %s412, 512
        $region64: #{tpu_custom_call.1} parent=51 // pred_fallthru
          _
        // Predicated region
        $region65: #{tpu_custom_call.1} parent=51 // pred_check
          %p420 = pneg %p157
        $region66: #{tpu_custom_call.1} parent=51 // pred_check_branch
          %422 = sbr.rel (%p420) target = $region68
        $region67: #{tpu_custom_call.1} parent=51 // pred_region
          %423 = dma.done [#allocation5], 16
        $region68: #{tpu_custom_call.1} parent=51 // pred_fallthru
          _
        %424 = sfence
        %s425 = sand.u32 %s51, 1
        %s426 = scalar_lea.sflag [#allocation3], %s425
        %s427 = sand.u32 %s51, 1
        %s428 = smul.addr %s427, 64
        %s429 = scalar_lea.vmem [#allocation2], %s428
        %p430 = pneg %p64
        %p431 = pneg %p61
        %s432 = sand.u32 %s29, 1
        %s433 = scalar_lea.sflag [#allocation7], %s432
        %s434 = sand.u32 %s87, 1
        %s435 = smul.addr %s434, 32
        %s436 = scalar_lea.vmem [#allocation6], %s435
        %p437 = pneg %p100
        %p438 = pneg %p97
        %s439 = sand.u32 %s29, 1
        %s440 = scalar_lea.sflag [#allocation7], %s439
        %s441 = sand.u32 %s123, 1
        %s442 = smul.addr %s441, 32
        %s443 = scalar_lea.vmem [#allocation8], %s442
        %p444 = pneg %p136
        %p445 = pneg %p133
        %p446 = pneg %p157
        %p447 = pneg %p154
        %p448 = pneg %p178
        %p449 = pneg %p175
        %p450 = pneg %p199
        %p451 = pneg %p196
        %p452 = pneg %p220
        %p453 = pneg %p217
        %p454 = pneg %p241
        %p455 = pneg %p238
        %p456 = pneg %p269
        %p457 = pneg %p266
        %s458 = sand.u32 %s256, 1
        %s459 = scalar_lea.sflag [#allocation4], %s458
        %s460 = sand.u32 %s256, 1
        %s461 = smul.addr %s460, 2
        %s462 = scalar_lea.vmem [#allocation10], %s461
        %s463 = smul.u32 2, %s34
        %s464 = smul.u32 %s34, 2
        %s465 = ssub.s32 %s464, 1
        %p466 = scmp.gt.s32.totalorder %s465, 0
        %s467 = scalar_select %p466, %s465, 0
        %s468 = sadd.s32 %s34, 1
        %s469 = smul.u32 %s468, 2
        %p470 = scmp.lt.s32.totalorder %s469, 1
        %s471 = scalar_select %p470, %s469, 1
        %v472 = vld [vmem:[%s397] sm:$0xff]
        %v473 = vld [vmem:[%s397 + $0x8] sm:$0xff]
        %s474 = scalar_lea.vmem %s397, 16 [#allocation2]
        %v475 = vld [vmem:[%s474] sm:$0xff]
        %v476 = vld [vmem:[%s474 + $0x8] sm:$0xff]
        %v477 = vadd.f32 %v472, %v475
        %v478 = vadd.f32 %v473, %v476
        %s479 = scalar_lea.vmem %s397, 32 [#allocation2]
        %v480 = vld [vmem:[%s479] sm:$0xff]
        %v481 = vld [vmem:[%s479 + $0x8] sm:$0xff]
        %v482 = vadd.f32 %v477, %v480
        %v483 = vadd.f32 %v478, %v481
        %s484 = scalar_lea.vmem %s397, 48 [#allocation2]
        %v485 = vld [vmem:[%s484] sm:$0xff]
        %v486 = vld [vmem:[%s484 + $0x8] sm:$0xff]
        %v487 = vadd.f32 %v482, %v485
        %v488 = vadd.f32 %v483, %v486
        %v489 = vmul.f32 %v487, 0.25
        %v490 = vmul.f32 %v488, 0.25
        %p491 = scmp.eq.s32.totalorder %s34, 0
        %s492 = scalar_select %p491, 0, 7
        %s493 = scalar_select %p491, 7, 0
        %s494 = scalar_lea.vmem %s406, %s492 [#allocation6]
        %v495 = vld [vmem:[%s494] sm:$0x1]
        %s496 = scalar_lea.vmem %s415, %s493 [#allocation8]
        %v497 = vld [vmem:[%s496] sm:$0x1]
        %s498 = sadd.s32 %s492, 8
        %s499 = scalar_lea.vmem %s406, %s498 [#allocation6]
        %v500 = vld [vmem:[%s499] sm:$0x1]
        %v501 = vadd.f32 %v495, %v500
        %s502 = sadd.s32 %s493, 8
        %s503 = scalar_lea.vmem %s415, %s502 [#allocation8]
        %v504 = vld [vmem:[%s503] sm:$0x1]
        %v505 = vadd.f32 %v497, %v504
        %s506 = sadd.s32 %s492, 16
        %s507 = scalar_lea.vmem %s406, %s506 [#allocation6]
        %v508 = vld [vmem:[%s507] sm:$0x1]
        %v509 = vadd.f32 %v501, %v508
        %s510 = sadd.s32 %s493, 16
        %s511 = scalar_lea.vmem %s415, %s510 [#allocation8]
        %v512 = vld [vmem:[%s511] sm:$0x1]
        %v513 = vadd.f32 %v505, %v512
        %s514 = sadd.s32 %s492, 24
        %s515 = scalar_lea.vmem %s406, %s514 [#allocation6]
        %v516 = vld [vmem:[%s515] sm:$0x1]
        %v517 = vadd.f32 %v509, %v516
        %s518 = sadd.s32 %s493, 24
        %s519 = scalar_lea.vmem %s415, %s518 [#allocation8]
        %v520 = vld [vmem:[%s519] sm:$0x1]
        %v521 = vadd.f32 %v513, %v520
        %v522 = vmul.f32 %v517, 0.25
        %v523 = vmul.f32 %v521, 0.25
        %vm526 = vcmask 1040384
        %v527 = vrot.slane %v489, 7
        %v528 = vrot.slane %v490, 7
        %v529 = vsel %vm526, %v527, %v528
        %v534 = vrot.slane %v523, 7
        %v536 = vsel %vm526, %v522, %v527
        %v537 = vsel %vm526, %v528, %v534
        %540 = vrot.lane.b32.xlu0 %v536, 1
        %v541 = vpop.permute.xlu0 %540
        %542 = vrot.lane.b32.xlu0 %v529, 1
        %v543 = vpop.permute.xlu0 %542
        %544 = vrot.lane.b32.xlu0 %v537, 1
        %v545 = vpop.permute.xlu0 %544
        %vm549 = vcmask 7168
        %v550 = vsel %vm549, %v536, %v541
        %v551 = vsel %vm549, %v529, %v543
        %v552 = vsel %vm549, %v537, %v545
        %553 = vrot.lane.b32.xlu0 %v536, 127
        %v554 = vpop.permute.xlu0 %553
        %555 = vrot.lane.b32.xlu0 %v529, 127
        %v556 = vpop.permute.xlu0 %555
        %557 = vrot.lane.b32.xlu0 %v537, 127
        %v558 = vpop.permute.xlu0 %557
        %vm562 = vcmask 121856
        %v563 = vsel %vm562, %v554, %v536
        %v564 = vsel %vm562, %v556, %v529
        %v565 = vsel %vm562, %v558, %v537
        %v566 = vmul.f32 %v536, 2.0
        %v567 = vmul.f32 %v529, 2.0
        %v568 = vmul.f32 %v537, 2.0
        %v569 = vadd.f32 %v550, %v566
        %v570 = vadd.f32 %v551, %v567
        %v571 = vadd.f32 %v552, %v568
        %v572 = vadd.f32 %v569, %v563
        %v573 = vadd.f32 %v570, %v564
        %v574 = vadd.f32 %v571, %v565
        %v575 = vsub.f32 %v550, %v563
        %v576 = vsub.f32 %v551, %v564
        %v577 = vsub.f32 %v552, %v565
        %v578 = vmul.f32 %v575, 2.0
        %v579 = vmul.f32 %v576, 2.0
        %v580 = vmul.f32 %v577, 2.0
        %vm584 = vcmask 1046528
        %v585 = vrot.slane %v578, 1
        %v586 = vrot.slane %v579, 1
        %v587 = vsel %vm584, %v585, %v586
        %v588 = vrot.slane %v580, 1
        %v589 = vsel %vm584, %v586, %v588
        %v592 = vadd.f32 %v575, %v587
        %v593 = vadd.f32 %v576, %v589
        %vm597 = vcmask 1045504
        %v598 = vrot.slane %v575, 2
        %v599 = vrot.slane %v576, 2
        %v600 = vsel %vm597, %v598, %v599
        %v601 = vrot.slane %v577, 2
        %v602 = vsel %vm597, %v599, %v601
        %v605 = vadd.f32 %v592, %v600
        %v606 = vadd.f32 %v593, %v602
        %s607 = sld [smem:[#allocation9]]
        %v608 = vstv %s607
        %v609 = vadd.f32 %v605, %v608
        %v610 = vadd.f32 %v606, %v608
        %v614 = vrot.slane %v572, 2
        %v615 = vrot.slane %v573, 2
        %v616 = vsel %vm597, %v614, %v615
        %v617 = vrot.slane %v574, 2
        %v618 = vsel %vm597, %v615, %v617
        %v621 = vsub.f32 %v572, %v616
        %v622 = vsub.f32 %v573, %v618
        %s623 = sld [smem:[#allocation9 + $0x1]]
        %v624 = vstv %s623
        %v625 = vadd.f32 %v621, %v624
        %v626 = vadd.f32 %v622, %v624
        %v627 = vmul.f32 %v609, %v609
        %v628 = vmul.f32 %v610, %v610
        %v629 = vmul.f32 %v625, %v625
        %v630 = vmul.f32 %v626, %v626
        %v631 = vadd.f32 %v627, %v629
        %v632 = vadd.f32 %v628, %v630
        %v633 = vrsqrt.pop %v631
        %v634 = vmul.f32 %v631, %v633
        %vm635 = vcmp.eq.f32.partialorder %v631, inf
        %v636 = vsel %vm635, %v631, %v634
        %vm637 = vcmp.eq.f32.partialorder %v631, 0.0
        %v638 = vand.u32 %v631, 2147483648
        %v639 = vsel %vm637, %v638, %v636
        %v640 = vrsqrt.pop %v632
        %v641 = vmul.f32 %v632, %v640
        %vm642 = vcmp.eq.f32.partialorder %v632, inf
        %v643 = vsel %vm642, %v632, %v641
        %vm644 = vcmp.eq.f32.partialorder %v632, 0.0
        %v645 = vand.u32 %v632, 2147483648
        %v646 = vsel %vm644, %v645, %v643
        %v647 = vand.u32 2147483647, %v609
        %v648 = vand.u32 2147483647, %v610
        %v649 = vand.u32 2147483647, %v625
        %v650 = vand.u32 2147483647, %v626
        %v651 = vmax.f32 %v647, %v649
        %v652 = vmax.f32 %v648, %v650
        %v653 = vmin.f32 %v647, %v649
        %v654 = vmin.f32 %v648, %v650
        %v655 = vmul.f32 %v651, 0.41421357
        %v656 = vmul.f32 %v652, 0.41421357
        %vm657 = vcmp.gt.f32.partialorder %v653, %v655
        %vm658 = vcmp.gt.f32.partialorder %v654, %v656
        %v659 = vsub.f32 %v653, %v651
        %v660 = vsub.f32 %v654, %v652
        %v661 = vsel %vm657, %v659, %v653
        %v662 = vsel %vm658, %v660, %v654
        %v663 = vadd.f32 %v653, %v651
        %v664 = vadd.f32 %v654, %v652
        %v665 = vsel %vm657, %v663, %v651
        %v666 = vsel %vm658, %v664, %v652
        %vm667 = vcmp.eq.f32.partialorder %v665, 0.0
        %vm668 = vcmp.eq.f32.partialorder %v666, 0.0
        %v669 = vsel %vm667, 1.0, %v665
        %v670 = vsel %vm668, 1.0, %v666
        %v671 = vrcp.pop %v669
        %v672 = vrcp.pop %v670
        %v673 = vmul.f32 %v661, %v671
        %v674 = vmul.f32 %v662, %v672
        %v675 = vmul.f32 %v673, %v673
        %v676 = vmul.f32 %v674, %v674
        %v677 = vmul.f32 %v675, 0.080537446
        %v678 = vmul.f32 %v676, 0.080537446
        %v679 = vsub.f32 %v677, 0.13877685
        %v680 = vsub.f32 %v678, 0.13877685
        %v681 = vmul.f32 %v679, %v675
        %v682 = vmul.f32 %v680, %v676
        %v683 = vadd.f32 %v681, 0.19977711
        %v684 = vadd.f32 %v682, 0.19977711
        %v685 = vmul.f32 %v683, %v675
        %v686 = vmul.f32 %v684, %v676
        %v687 = vsub.f32 %v685, 0.3333295
        %v688 = vsub.f32 %v686, 0.3333295
        %v689 = vmul.f32 %v687, %v675
        %v690 = vmul.f32 %v688, %v676
        %v691 = vmul.f32 %v689, %v673
        %v692 = vmul.f32 %v690, %v674
        %v693 = vadd.f32 %v691, %v673
        %v694 = vadd.f32 %v692, %v674
        %v695 = vadd.f32 %v693, 0.7853982
        %v696 = vadd.f32 %v694, 0.7853982
        %v697 = vsel %vm657, %v695, %v693
        %v698 = vsel %vm658, %v696, %v694
        %vm699 = vcmp.gt.f32.partialorder %v649, %v647
        %vm700 = vcmp.gt.f32.partialorder %v650, %v648
        %v701 = vsub.f32 1.5707964, %v697
        %v702 = vsub.f32 1.5707964, %v698
        %v703 = vsel %vm699, %v701, %v697
        %v704 = vsel %vm700, %v702, %v698
        %vm705 = vcmp.lt.f32.partialorder %v609, 0.0
        %vm706 = vcmp.lt.f32.partialorder %v610, 0.0
        %v707 = vsub.f32 3.1415927, %v703
        %v708 = vsub.f32 3.1415927, %v704
        %v709 = vsel %vm705, %v707, %v703
        %v710 = vsel %vm706, %v708, %v704
        %vm711 = vcmp.lt.f32.partialorder %v625, 0.0
        %vm712 = vcmp.lt.f32.partialorder %v626, 0.0
        %v713 = vsub.f32 0.0, %v709
        %v714 = vsub.f32 0.0, %v710
        %v715 = vsel %vm711, %v713, %v709
        %v716 = vsel %vm712, %v714, %v710
        %v717 = vmul.f32 %v715, 3.1830988
        %v718 = vmul.f32 %v716, 3.1830988
        %vm719 = vcmp.lt.f32.partialorder %v717, 0.0
        %vm720 = vcmp.lt.f32.partialorder %v718, 0.0
        %v721 = vadd.f32 %v717, 9.0
        %v722 = vadd.f32 %v718, 9.0
        %v723 = vsel %vm719, %v721, %v717
        %v724 = vsel %vm720, %v722, %v718
        %v725 = vcvt.f32.s32.to.zero.pseudo %v723
        %v726 = vcvt.f32.s32.to.zero.pseudo %v724
        %v727 = vcvt.s32.f32 %v725
        %v728 = vcvt.s32.f32 %v726
        %vm729 = vcmp.gt.f32.partialorder %v727, %v723
        %vm730 = vcmp.gt.f32.partialorder %v728, %v724
        %v731 = vsub.s32 %v725, 1
        %v732 = vsub.s32 %v726, 1
        %v733 = vsel %vm729, %v731, %v725
        %v734 = vsel %vm730, %v732, %v726
        %v735 = vcvt.s32.f32 %v733
        %v736 = vcvt.s32.f32 %v734
        %vm737 = vcmp.lt.f32.partialorder %v727, %v723
        %vm738 = vcmp.lt.f32.partialorder %v728, %v724
        %v739 = vadd.f32 %v727, 1.0
        %v740 = vadd.f32 %v728, 1.0
        %v741 = vsel %vm737, %v739, %v727
        %v742 = vsel %vm738, %v740, %v728
        %v743 = vsub.f32 %v723, %v735
        %v744 = vsub.f32 %v724, %v736
        %v745 = vmul.f32 %v639, %v743
        %v746 = vmul.f32 %v646, %v744
        %v747 = vsub.f32 %v741, %v723
        %v748 = vsub.f32 %v742, %v724
        %v749 = vmul.f32 %v639, %v747
        %v750 = vmul.f32 %v646, %v748
        %vm751 = vcmp.lt.s32.totalorder %v733, 0
        %vm752 = vcmp.lt.s32.totalorder %v734, 0
        %v753 = vadd.s32 %v733, 10
        %v754 = vadd.s32 %v734, 10
        %vm755 = vcmp.ge.s32.totalorder %v733, 10
        %vm756 = vcmp.ge.s32.totalorder %v734, 10
        %v757 = vsub.s32 %v733, 10
        %v758 = vsub.s32 %v734, 10
        %v759 = vsel %vm755, %v757, %v733
        %v760 = vsel %vm756, %v758, %v734
        %v761 = vsel %vm751, %v753, %v759
        %v762 = vsel %vm752, %v754, %v760
        %vm763 = vcmp.eq.s32.totalorder %v761, 0
        %vm764 = vcmp.eq.s32.totalorder %v762, 0
        %vm765 = vcmp.eq.s32.totalorder %v761, 1
        %vm766 = vcmp.eq.s32.totalorder %v762, 1
        %vm767 = vcmp.eq.s32.totalorder %v761, 2
        %vm768 = vcmp.eq.s32.totalorder %v762, 2
        %vm769 = vcmp.eq.s32.totalorder %v761, 3
        %vm770 = vcmp.eq.s32.totalorder %v762, 3
        %vm771 = vcmp.eq.s32.totalorder %v761, 4
        %vm772 = vcmp.eq.s32.totalorder %v762, 4
        %vm773 = vcmp.eq.s32.totalorder %v761, 5
        %vm774 = vcmp.eq.s32.totalorder %v762, 5
        %vm775 = vcmp.eq.s32.totalorder %v761, 6
        %vm776 = vcmp.eq.s32.totalorder %v762, 6
        %vm777 = vcmp.eq.s32.totalorder %v761, 7
        %vm778 = vcmp.eq.s32.totalorder %v762, 7
        %vm779 = vcmp.eq.s32.totalorder %v761, 8
        %vm780 = vcmp.eq.s32.totalorder %v762, 8
        %vm781 = vcmp.eq.s32.totalorder %v761, 9
        %vm782 = vcmp.eq.s32.totalorder %v762, 9
        %v783 = vsel %vm781, %v745, 0.0
        %v784 = vsel %vm782, %v746, 0.0
        %v785 = vsel %vm763, %v749, %v783
        %v786 = vsel %vm764, %v750, %v784
        %v787 = vsel %vm763, %v745, 0.0
        %v788 = vsel %vm764, %v746, 0.0
        %v789 = vsel %vm765, %v749, %v787
        %v790 = vsel %vm766, %v750, %v788
        %v791 = vsel %vm765, %v745, 0.0
        %v792 = vsel %vm766, %v746, 0.0
        %v793 = vsel %vm767, %v749, %v791
        %v794 = vsel %vm768, %v750, %v792
        %v795 = vsel %vm767, %v745, 0.0
        %v796 = vsel %vm768, %v746, 0.0
        %v797 = vsel %vm769, %v749, %v795
        %v798 = vsel %vm770, %v750, %v796
        %v799 = vsel %vm769, %v745, 0.0
        %v800 = vsel %vm770, %v746, 0.0
        %v801 = vsel %vm771, %v749, %v799
        %v802 = vsel %vm772, %v750, %v800
        %v803 = vsel %vm771, %v745, 0.0
        %v804 = vsel %vm772, %v746, 0.0
        %v805 = vsel %vm773, %v749, %v803
        %v806 = vsel %vm774, %v750, %v804
        %v807 = vsel %vm773, %v745, 0.0
        %v808 = vsel %vm774, %v746, 0.0
        %v809 = vsel %vm775, %v749, %v807
        %v810 = vsel %vm776, %v750, %v808
        %v811 = vsel %vm775, %v745, 0.0
        %v812 = vsel %vm776, %v746, 0.0
        %v813 = vsel %vm777, %v749, %v811
        %v814 = vsel %vm778, %v750, %v812
        %v815 = vsel %vm777, %v745, 0.0
        %v816 = vsel %vm778, %v746, 0.0
        %v817 = vsel %vm779, %v749, %v815
        %v818 = vsel %vm780, %v750, %v816
        %v819 = vsel %vm779, %v745, 0.0
        %v820 = vsel %vm780, %v746, 0.0
        %v821 = vsel %vm781, %v749, %v819
        %v822 = vsel %vm782, %v750, %v820
        %825 = vrot.lane.b32.xlu0 %v789, 16
        %v826 = vpop.permute.xlu0 %825
        %827 = vrot.lane.b32.xlu0 %v790, 16
        %v828 = vpop.permute.xlu0 %827
        %833 = vrot.lane.b32.xlu0 %v793, 32
        %v834 = vpop.permute.xlu0 %833
        %835 = vrot.lane.b32.xlu0 %v794, 32
        %v836 = vpop.permute.xlu0 %835
        %841 = vrot.lane.b32.xlu0 %v797, 48
        %v842 = vpop.permute.xlu0 %841
        %843 = vrot.lane.b32.xlu0 %v798, 48
        %v844 = vpop.permute.xlu0 %843
        %849 = vrot.lane.b32.xlu0 %v801, 64
        %v850 = vpop.permute.xlu0 %849
        %851 = vrot.lane.b32.xlu0 %v802, 64
        %v852 = vpop.permute.xlu0 %851
        %857 = vrot.lane.b32.xlu0 %v805, 80
        %v858 = vpop.permute.xlu0 %857
        %859 = vrot.lane.b32.xlu0 %v806, 80
        %v860 = vpop.permute.xlu0 %859
        %865 = vrot.lane.b32.xlu0 %v809, 96
        %v866 = vpop.permute.xlu0 %865
        %867 = vrot.lane.b32.xlu0 %v810, 96
        %v868 = vpop.permute.xlu0 %867
        %873 = vrot.lane.b32.xlu0 %v813, 112
        %v874 = vpop.permute.xlu0 %873
        %875 = vrot.lane.b32.xlu0 %v814, 112
        %v876 = vpop.permute.xlu0 %875
        %881 = vrot.lane.b32.xlu0 %v821, 16
        %v882 = vpop.permute.xlu0 %881
        %883 = vrot.lane.b32.xlu0 %v822, 16
        %v884 = vpop.permute.xlu0 %883
        %vm887 = vcmask 130048
        %v888 = vsel %vm887, %v785, %v826
        %v889 = vsel %vm887, %v786, %v828
        %vm890 = vcmask 261120
        %v891 = vsel %vm890, %v888, %v834
        %v892 = vsel %vm890, %v889, %v836
        %vm893 = vcmask 392192
        %v894 = vsel %vm893, %v891, %v842
        %v895 = vsel %vm893, %v892, %v844
        %vm896 = vcmask 523264
        %v897 = vsel %vm896, %v894, %v850
        %v898 = vsel %vm896, %v895, %v852
        %vm899 = vcmask 654336
        %v900 = vsel %vm899, %v897, %v858
        %v901 = vsel %vm899, %v898, %v860
        %vm902 = vcmask 785408
        %v903 = vsel %vm902, %v900, %v866
        %v904 = vsel %vm902, %v901, %v868
        %vm905 = vcmask 916480
        %v906 = vsel %vm905, %v903, %v874
        %v907 = vsel %vm905, %v904, %v876
        %v908 = vsel %vm887, %v817, %v882
        %v909 = vsel %vm887, %v818, %v884
        %v910 = vld [vmem:[%s4] sm:$0x3]
        %v912 = vsel %vm887, %v910, 0
        %914 = vmatprep.subr.mxu0 %v908
        %915 = vmatpush1.msra.mxu0 %v906
        %916 = vmatprep.subr.mxu0 %v909
        %917 = vmatpush1.msra.mxu0 %v907
        %918 = vmatprep.subr.mxu0 0.0
        %919 = vmatpush1.msra.mxu0 0.0
        %920 = vmatprep.subr.mxu0 0.0
        %921 = vmatpush1.msra.mxu0 0.0
        %922 = vmatprep.subr.mxu0 0.0
        %923 = vmatpush1.msra.mxu0 0.0
        %924 = vmatprep.subr.mxu0 0.0
        %925 = vmatpush1.msra.mxu0 0.0
        %926 = vmatprep.subr.mxu0 0.0
        %927 = vmatpush1.msra.mxu0 0.0
        %928 = vmatprep.subr.mxu0 0.0
        %929 = vmatpush1.msra.mxu0 0.0
        %930 = vmatprep.subr.mxu0 0.0
        %931 = vmatpush1.msra.mxu0 0.0
        %932 = vmatprep.subr.mxu0 0.0
        %933 = vmatpush1.msra.mxu0 0.0
        %934 = vmatprep.subr.mxu0 0.0
        %935 = vmatpush1.msra.mxu0 0.0
        %936 = vmatprep.subr.mxu0 0.0
        %937 = vmatpush1.msra.mxu0 0.0
        %938 = vmatprep.subr.mxu0 0.0
        %939 = vmatpush1.msra.mxu0 0.0
        %940 = vmatprep.subr.mxu0 0.0
        %941 = vmatpush1.msra.mxu0 0.0
        %942 = vmatprep.subr.mxu0 0.0
        %943 = vmatpush1.msra.mxu0 0.0
        %944 = vmatprep.subr.mxu0 0.0
        %945 = vmatpush1.msra.mxu0 0.0
        %946 = vmatprep.subr.mxu0 0.0
        %947 = vmatpush1.msra.mxu0 0.0
        %948 = vmatprep.subr.mxu0 0.0
        %949 = vmatpush1.msra.mxu0 0.0
        %950 = vmatprep.subr.mxu0 0.0
        %951 = vmatpush1.msra.mxu0 0.0
        %952 = vmatprep.subr.mxu0 0.0
        %953 = vmatpush1.msra.mxu0 0.0
        %954 = vmatprep.subr.mxu0 0.0
        %955 = vmatpush1.msra.mxu0 0.0
        %956 = vmatprep.subr.mxu0 0.0
        %957 = vmatpush1.msra.mxu0 0.0
        %958 = vmatprep.subr.mxu0 0.0
        %959 = vmatpush1.msra.mxu0 0.0
        %960 = vmatprep.subr.mxu0 0.0
        %961 = vmatpush1.msra.mxu0 0.0
        %962 = vmatprep.subr.mxu0 0.0
        %963 = vmatpush1.msra.mxu0 0.0
        %964 = vmatprep.subr.mxu0 0.0
        %965 = vmatpush1.msra.mxu0 0.0
        %966 = vmatprep.subr.mxu0 0.0
        %967 = vmatpush1.msra.mxu0 0.0
        %968 = vmatprep.subr.mxu0 0.0
        %969 = vmatpush1.msra.mxu0 0.0
        %970 = vmatprep.subr.mxu0 0.0
        %971 = vmatpush1.msra.mxu0 0.0
        %972 = vmatprep.subr.mxu0 0.0
        %973 = vmatpush1.msra.mxu0 0.0
        %974 = vmatprep.subr.mxu0 0.0
        %975 = vmatpush1.msra.mxu0 0.0
        %976 = vmatprep.subr.mxu0 0.0
        %977 = vmatpush1.msra.mxu0 0.0
        %978 = vmatprep.mubr.f32.mxu0 0.0
        %979 = vmatmul.mubr.f32.gmra.mrb[0].mxu0 %v912
        %v980 = vpop.f32.mrb[0].mxu0
        %v981 = vadd.f32 0.0, %v980
        %v982 = vpop.f32.mrb[0].mxu0
        %v983 = vadd.f32 0.0, %v982
        %984 = vdwg.mxu0
        %v985 = vld [vmem:[%s5] sm:$0xff]
        %v986 = vld [vmem:[%s5 + $0x8] sm:$0xff]
        %v988 = vsel %vm887, %v981, 0
        %990 = vmatprep.subr.mxu0 0.0
        %991 = vmatpush1.msra.mxu0 %v985
        %992 = vmatprep.subr.mxu0 0.0
        %993 = vmatpush1.msra.mxu0 %v986
        %994 = vmatprep.subr.mxu0 0.0
        %995 = vmatpush1.msra.mxu0 0.0
        %996 = vmatprep.subr.mxu0 0.0
        %997 = vmatpush1.msra.mxu0 0.0
        %998 = vmatprep.subr.mxu0 0.0
        %999 = vmatpush1.msra.mxu0 0.0
        %1000 = vmatprep.subr.mxu0 0.0
        %1001 = vmatpush1.msra.mxu0 0.0
        %1002 = vmatprep.subr.mxu0 0.0
        %1003 = vmatpush1.msra.mxu0 0.0
        %1004 = vmatprep.subr.mxu0 0.0
        %1005 = vmatpush1.msra.mxu0 0.0
        %1006 = vmatprep.subr.mxu0 0.0
        %1007 = vmatpush1.msra.mxu0 0.0
        %1008 = vmatprep.subr.mxu0 0.0
        %1009 = vmatpush1.msra.mxu0 0.0
        %1010 = vmatprep.subr.mxu0 0.0
        %1011 = vmatpush1.msra.mxu0 0.0
        %1012 = vmatprep.subr.mxu0 0.0
        %1013 = vmatpush1.msra.mxu0 0.0
        %1014 = vmatprep.subr.mxu0 0.0
        %1015 = vmatpush1.msra.mxu0 0.0
        %1016 = vmatprep.subr.mxu0 0.0
        %1017 = vmatpush1.msra.mxu0 0.0
        %1018 = vmatprep.subr.mxu0 0.0
        %1019 = vmatpush1.msra.mxu0 0.0
        %1020 = vmatprep.subr.mxu0 0.0
        %1021 = vmatpush1.msra.mxu0 0.0
        %1022 = vmatprep.subr.mxu0 0.0
        %1023 = vmatpush1.msra.mxu0 0.0
        %1024 = vmatprep.subr.mxu0 0.0
        %1025 = vmatpush1.msra.mxu0 0.0
        %1026 = vmatprep.subr.mxu0 0.0
        %1027 = vmatpush1.msra.mxu0 0.0
        %1028 = vmatprep.subr.mxu0 0.0
        %1029 = vmatpush1.msra.mxu0 0.0
        %1030 = vmatprep.subr.mxu0 0.0
        %1031 = vmatpush1.msra.mxu0 0.0
        %1032 = vmatprep.subr.mxu0 0.0
        %1033 = vmatpush1.msra.mxu0 0.0
        %1034 = vmatprep.subr.mxu0 0.0
        %1035 = vmatpush1.msra.mxu0 0.0
        %1036 = vmatprep.subr.mxu0 0.0
        %1037 = vmatpush1.msra.mxu0 0.0
        %1038 = vmatprep.subr.mxu0 0.0
        %1039 = vmatpush1.msra.mxu0 0.0
        %1040 = vmatprep.subr.mxu0 0.0
        %1041 = vmatpush1.msra.mxu0 0.0
        %1042 = vmatprep.subr.mxu0 0.0
        %1043 = vmatpush1.msra.mxu0 0.0
        %1044 = vmatprep.subr.mxu0 0.0
        %1045 = vmatpush1.msra.mxu0 0.0
        %1046 = vmatprep.subr.mxu0 0.0
        %1047 = vmatpush1.msra.mxu0 0.0
        %1048 = vmatprep.subr.mxu0 0.0
        %1049 = vmatpush1.msra.mxu0 0.0
        %1050 = vmatprep.subr.mxu0 0.0
        %1051 = vmatpush1.msra.mxu0 0.0
        %1052 = vmatprep.subr.mxu0 0.0
        %1053 = vmatpush1.msra.mxu0 0.0
        %1054 = vmatprep.mubr.f32.mxu0 0.0
        %1055 = vmatmul.mubr.f32.gmra.mrb[0].mxu0 %v988
        %v1056 = vpop.f32.mrb[0].mxu0
        %v1057 = vadd.f32 0.0, %v1056
        %v1058 = vpop.f32.mrb[0].mxu0
        %1059 = vdwg.mxu0
        %v1060 = vmul.f32 %v1057, %v1057
        %1061 = vrot.lane.b32.xlu0 %v981, 112
        %v1062 = vpop.permute.xlu0 %1061
        %v1063 = vsel %vm887, %v1062, 0
        %1065 = vmatprep.subr.mxu0 0.0
        %1066 = vmatpush1.msra.mxu0 %v985
        %1067 = vmatprep.subr.mxu0 0.0
        %1068 = vmatpush1.msra.mxu0 %v986
        %1069 = vmatprep.subr.mxu0 0.0
        %1070 = vmatpush1.msra.mxu0 0.0
        %1071 = vmatprep.subr.mxu0 0.0
        %1072 = vmatpush1.msra.mxu0 0.0
        %1073 = vmatprep.subr.mxu0 0.0
        %1074 = vmatpush1.msra.mxu0 0.0
        %1075 = vmatprep.subr.mxu0 0.0
        %1076 = vmatpush1.msra.mxu0 0.0
        %1077 = vmatprep.subr.mxu0 0.0
        %1078 = vmatpush1.msra.mxu0 0.0
        %1079 = vmatprep.subr.mxu0 0.0
        %1080 = vmatpush1.msra.mxu0 0.0
        %1081 = vmatprep.subr.mxu0 0.0
        %1082 = vmatpush1.msra.mxu0 0.0
        %1083 = vmatprep.subr.mxu0 0.0
        %1084 = vmatpush1.msra.mxu0 0.0
        %1085 = vmatprep.subr.mxu0 0.0
        %1086 = vmatpush1.msra.mxu0 0.0
        %1087 = vmatprep.subr.mxu0 0.0
        %1088 = vmatpush1.msra.mxu0 0.0
        %1089 = vmatprep.subr.mxu0 0.0
        %1090 = vmatpush1.msra.mxu0 0.0
        %1091 = vmatprep.subr.mxu0 0.0
        %1092 = vmatpush1.msra.mxu0 0.0
        %1093 = vmatprep.subr.mxu0 0.0
        %1094 = vmatpush1.msra.mxu0 0.0
        %1095 = vmatprep.subr.mxu0 0.0
        %1096 = vmatpush1.msra.mxu0 0.0
        %1097 = vmatprep.subr.mxu0 0.0
        %1098 = vmatpush1.msra.mxu0 0.0
        %1099 = vmatprep.subr.mxu0 0.0
        %1100 = vmatpush1.msra.mxu0 0.0
        %1101 = vmatprep.subr.mxu0 0.0
        %1102 = vmatpush1.msra.mxu0 0.0
        %1103 = vmatprep.subr.mxu0 0.0
        %1104 = vmatpush1.msra.mxu0 0.0
        %1105 = vmatprep.subr.mxu0 0.0
        %1106 = vmatpush1.msra.mxu0 0.0
        %1107 = vmatprep.subr.mxu0 0.0
        %1108 = vmatpush1.msra.mxu0 0.0
        %1109 = vmatprep.subr.mxu0 0.0
        %1110 = vmatpush1.msra.mxu0 0.0
        %1111 = vmatprep.subr.mxu0 0.0
        %1112 = vmatpush1.msra.mxu0 0.0
        %1113 = vmatprep.subr.mxu0 0.0
        %1114 = vmatpush1.msra.mxu0 0.0
        %1115 = vmatprep.subr.mxu0 0.0
        %1116 = vmatpush1.msra.mxu0 0.0
        %1117 = vmatprep.subr.mxu0 0.0
        %1118 = vmatpush1.msra.mxu0 0.0
        %1119 = vmatprep.subr.mxu0 0.0
        %1120 = vmatpush1.msra.mxu0 0.0
        %1121 = vmatprep.subr.mxu0 0.0
        %1122 = vmatpush1.msra.mxu0 0.0
        %1123 = vmatprep.subr.mxu0 0.0
        %1124 = vmatpush1.msra.mxu0 0.0
        %1125 = vmatprep.subr.mxu0 0.0
        %1126 = vmatpush1.msra.mxu0 0.0
        %1127 = vmatprep.subr.mxu0 0.0
        %1128 = vmatpush1.msra.mxu0 0.0
        %1129 = vmatprep.mubr.f32.mxu0 0.0
        %1130 = vmatmul.mubr.f32.gmra.mrb[0].mxu0 %v1063
        %v1131 = vpop.f32.mrb[0].mxu0
        %v1132 = vadd.f32 0.0, %v1131
        %v1133 = vpop.f32.mrb[0].mxu0
        %1134 = vdwg.mxu0
        %v1135 = vmul.f32 %v1132, %v1132
        %v1136 = vadd.f32 %v1060, %v1135
        %1137 = vrot.lane.b32.xlu0 %v981, 96
        %v1138 = vpop.permute.xlu0 %1137
        %v1139 = vsel %vm887, %v1138, 0
        %1141 = vmatprep.subr.mxu0 0.0
        %1142 = vmatpush1.msra.mxu0 %v985
        %1143 = vmatprep.subr.mxu0 0.0
        %1144 = vmatpush1.msra.mxu0 %v986
        %1145 = vmatprep.subr.mxu0 0.0
        %1146 = vmatpush1.msra.mxu0 0.0
        %1147 = vmatprep.subr.mxu0 0.0
        %1148 = vmatpush1.msra.mxu0 0.0
        %1149 = vmatprep.subr.mxu0 0.0
        %1150 = vmatpush1.msra.mxu0 0.0
        %1151 = vmatprep.subr.mxu0 0.0
        %1152 = vmatpush1.msra.mxu0 0.0
        %1153 = vmatprep.subr.mxu0 0.0
        %1154 = vmatpush1.msra.mxu0 0.0
        %1155 = vmatprep.subr.mxu0 0.0
        %1156 = vmatpush1.msra.mxu0 0.0
        %1157 = vmatprep.subr.mxu0 0.0
        %1158 = vmatpush1.msra.mxu0 0.0
        %1159 = vmatprep.subr.mxu0 0.0
        %1160 = vmatpush1.msra.mxu0 0.0
        %1161 = vmatprep.subr.mxu0 0.0
        %1162 = vmatpush1.msra.mxu0 0.0
        %1163 = vmatprep.subr.mxu0 0.0
        %1164 = vmatpush1.msra.mxu0 0.0
        %1165 = vmatprep.subr.mxu0 0.0
        %1166 = vmatpush1.msra.mxu0 0.0
        %1167 = vmatprep.subr.mxu0 0.0
        %1168 = vmatpush1.msra.mxu0 0.0
        %1169 = vmatprep.subr.mxu0 0.0
        %1170 = vmatpush1.msra.mxu0 0.0
        %1171 = vmatprep.subr.mxu0 0.0
        %1172 = vmatpush1.msra.mxu0 0.0
        %1173 = vmatprep.subr.mxu0 0.0
        %1174 = vmatpush1.msra.mxu0 0.0
        %1175 = vmatprep.subr.mxu0 0.0
        %1176 = vmatpush1.msra.mxu0 0.0
        %1177 = vmatprep.subr.mxu0 0.0
        %1178 = vmatpush1.msra.mxu0 0.0
        %1179 = vmatprep.subr.mxu0 0.0
        %1180 = vmatpush1.msra.mxu0 0.0
        %1181 = vmatprep.subr.mxu0 0.0
        %1182 = vmatpush1.msra.mxu0 0.0
        %1183 = vmatprep.subr.mxu0 0.0
        %1184 = vmatpush1.msra.mxu0 0.0
        %1185 = vmatprep.subr.mxu0 0.0
        %1186 = vmatpush1.msra.mxu0 0.0
        %1187 = vmatprep.subr.mxu0 0.0
        %1188 = vmatpush1.msra.mxu0 0.0
        %1189 = vmatprep.subr.mxu0 0.0
        %1190 = vmatpush1.msra.mxu0 0.0
        %1191 = vmatprep.subr.mxu0 0.0
        %1192 = vmatpush1.msra.mxu0 0.0
        %1193 = vmatprep.subr.mxu0 0.0
        %1194 = vmatpush1.msra.mxu0 0.0
        %1195 = vmatprep.subr.mxu0 0.0
        %1196 = vmatpush1.msra.mxu0 0.0
        %1197 = vmatprep.subr.mxu0 0.0
        %1198 = vmatpush1.msra.mxu0 0.0
        %1199 = vmatprep.subr.mxu0 0.0
        %1200 = vmatpush1.msra.mxu0 0.0
        %1201 = vmatprep.subr.mxu0 0.0
        %1202 = vmatpush1.msra.mxu0 0.0
        %1203 = vmatprep.subr.mxu0 0.0
        %1204 = vmatpush1.msra.mxu0 0.0
        %1205 = vmatprep.mubr.f32.mxu0 0.0
        %1206 = vmatmul.mubr.f32.gmra.mrb[0].mxu0 %v1139
        %v1207 = vpop.f32.mrb[0].mxu0
        %v1208 = vadd.f32 0.0, %v1207
        %v1209 = vpop.f32.mrb[0].mxu0
        %1210 = vdwg.mxu0
        %v1211 = vmul.f32 %v1208, %v1208
        %v1212 = vadd.f32 %v1136, %v1211
        %1213 = vrot.lane.b32.xlu0 %v981, 80
        %v1214 = vpop.permute.xlu0 %1213
        %v1215 = vsel %vm887, %v1214, 0
        %1217 = vmatprep.subr.mxu0 0.0
        %1218 = vmatpush1.msra.mxu0 %v985
        %1219 = vmatprep.subr.mxu0 0.0
        %1220 = vmatpush1.msra.mxu0 %v986
        %1221 = vmatprep.subr.mxu0 0.0
        %1222 = vmatpush1.msra.mxu0 0.0
        %1223 = vmatprep.subr.mxu0 0.0
        %1224 = vmatpush1.msra.mxu0 0.0
        %1225 = vmatprep.subr.mxu0 0.0
        %1226 = vmatpush1.msra.mxu0 0.0
        %1227 = vmatprep.subr.mxu0 0.0
        %1228 = vmatpush1.msra.mxu0 0.0
        %1229 = vmatprep.subr.mxu0 0.0
        %1230 = vmatpush1.msra.mxu0 0.0
        %1231 = vmatprep.subr.mxu0 0.0
        %1232 = vmatpush1.msra.mxu0 0.0
        %1233 = vmatprep.subr.mxu0 0.0
        %1234 = vmatpush1.msra.mxu0 0.0
        %1235 = vmatprep.subr.mxu0 0.0
        %1236 = vmatpush1.msra.mxu0 0.0
        %1237 = vmatprep.subr.mxu0 0.0
        %1238 = vmatpush1.msra.mxu0 0.0
        %1239 = vmatprep.subr.mxu0 0.0
        %1240 = vmatpush1.msra.mxu0 0.0
        %1241 = vmatprep.subr.mxu0 0.0
        %1242 = vmatpush1.msra.mxu0 0.0
        %1243 = vmatprep.subr.mxu0 0.0
        %1244 = vmatpush1.msra.mxu0 0.0
        %1245 = vmatprep.subr.mxu0 0.0
        %1246 = vmatpush1.msra.mxu0 0.0
        %1247 = vmatprep.subr.mxu0 0.0
        %1248 = vmatpush1.msra.mxu0 0.0
        %1249 = vmatprep.subr.mxu0 0.0
        %1250 = vmatpush1.msra.mxu0 0.0
        %1251 = vmatprep.subr.mxu0 0.0
        %1252 = vmatpush1.msra.mxu0 0.0
        %1253 = vmatprep.subr.mxu0 0.0
        %1254 = vmatpush1.msra.mxu0 0.0
        %1255 = vmatprep.subr.mxu0 0.0
        %1256 = vmatpush1.msra.mxu0 0.0
        %1257 = vmatprep.subr.mxu0 0.0
        %1258 = vmatpush1.msra.mxu0 0.0
        %1259 = vmatprep.subr.mxu0 0.0
        %1260 = vmatpush1.msra.mxu0 0.0
        %1261 = vmatprep.subr.mxu0 0.0
        %1262 = vmatpush1.msra.mxu0 0.0
        %1263 = vmatprep.subr.mxu0 0.0
        %1264 = vmatpush1.msra.mxu0 0.0
        %1265 = vmatprep.subr.mxu0 0.0
        %1266 = vmatpush1.msra.mxu0 0.0
        %1267 = vmatprep.subr.mxu0 0.0
        %1268 = vmatpush1.msra.mxu0 0.0
        %1269 = vmatprep.subr.mxu0 0.0
        %1270 = vmatpush1.msra.mxu0 0.0
        %1271 = vmatprep.subr.mxu0 0.0
        %1272 = vmatpush1.msra.mxu0 0.0
        %1273 = vmatprep.subr.mxu0 0.0
        %1274 = vmatpush1.msra.mxu0 0.0
        %1275 = vmatprep.subr.mxu0 0.0
        %1276 = vmatpush1.msra.mxu0 0.0
        %1277 = vmatprep.subr.mxu0 0.0
        %1278 = vmatpush1.msra.mxu0 0.0
        %1279 = vmatprep.subr.mxu0 0.0
        %1280 = vmatpush1.msra.mxu0 0.0
        %1281 = vmatprep.mubr.f32.mxu0 0.0
        %1282 = vmatmul.mubr.f32.gmra.mrb[0].mxu0 %v1215
        %v1283 = vpop.f32.mrb[0].mxu0
        %v1284 = vadd.f32 0.0, %v1283
        %v1285 = vpop.f32.mrb[0].mxu0
        %1286 = vdwg.mxu0
        %v1287 = vmul.f32 %v1284, %v1284
        %v1288 = vadd.f32 %v1212, %v1287
        %1289 = vrot.lane.b32.xlu0 %v981, 64
        %v1290 = vpop.permute.xlu0 %1289
        %v1291 = vsel %vm887, %v1290, 0
        %1293 = vmatprep.subr.mxu0 0.0
        %1294 = vmatpush1.msra.mxu0 %v985
        %1295 = vmatprep.subr.mxu0 0.0
        %1296 = vmatpush1.msra.mxu0 %v986
        %1297 = vmatprep.subr.mxu0 0.0
        %1298 = vmatpush1.msra.mxu0 0.0
        %1299 = vmatprep.subr.mxu0 0.0
        %1300 = vmatpush1.msra.mxu0 0.0
        %1301 = vmatprep.subr.mxu0 0.0
        %1302 = vmatpush1.msra.mxu0 0.0
        %1303 = vmatprep.subr.mxu0 0.0
        %1304 = vmatpush1.msra.mxu0 0.0
        %1305 = vmatprep.subr.mxu0 0.0
        %1306 = vmatpush1.msra.mxu0 0.0
        %1307 = vmatprep.subr.mxu0 0.0
        %1308 = vmatpush1.msra.mxu0 0.0
        %1309 = vmatprep.subr.mxu0 0.0
        %1310 = vmatpush1.msra.mxu0 0.0
        %1311 = vmatprep.subr.mxu0 0.0
        %1312 = vmatpush1.msra.mxu0 0.0
        %1313 = vmatprep.subr.mxu0 0.0
        %1314 = vmatpush1.msra.mxu0 0.0
        %1315 = vmatprep.subr.mxu0 0.0
        %1316 = vmatpush1.msra.mxu0 0.0
        %1317 = vmatprep.subr.mxu0 0.0
        %1318 = vmatpush1.msra.mxu0 0.0
        %1319 = vmatprep.subr.mxu0 0.0
        %1320 = vmatpush1.msra.mxu0 0.0
        %1321 = vmatprep.subr.mxu0 0.0
        %1322 = vmatpush1.msra.mxu0 0.0
        %1323 = vmatprep.subr.mxu0 0.0
        %1324 = vmatpush1.msra.mxu0 0.0
        %1325 = vmatprep.subr.mxu0 0.0
        %1326 = vmatpush1.msra.mxu0 0.0
        %1327 = vmatprep.subr.mxu0 0.0
        %1328 = vmatpush1.msra.mxu0 0.0
        %1329 = vmatprep.subr.mxu0 0.0
        %1330 = vmatpush1.msra.mxu0 0.0
        %1331 = vmatprep.subr.mxu0 0.0
        %1332 = vmatpush1.msra.mxu0 0.0
        %1333 = vmatprep.subr.mxu0 0.0
        %1334 = vmatpush1.msra.mxu0 0.0
        %1335 = vmatprep.subr.mxu0 0.0
        %1336 = vmatpush1.msra.mxu0 0.0
        %1337 = vmatprep.subr.mxu0 0.0
        %1338 = vmatpush1.msra.mxu0 0.0
        %1339 = vmatprep.subr.mxu0 0.0
        %1340 = vmatpush1.msra.mxu0 0.0
        %1341 = vmatprep.subr.mxu0 0.0
        %1342 = vmatpush1.msra.mxu0 0.0
        %1343 = vmatprep.subr.mxu0 0.0
        %1344 = vmatpush1.msra.mxu0 0.0
        %1345 = vmatprep.subr.mxu0 0.0
        %1346 = vmatpush1.msra.mxu0 0.0
        %1347 = vmatprep.subr.mxu0 0.0
        %1348 = vmatpush1.msra.mxu0 0.0
        %1349 = vmatprep.subr.mxu0 0.0
        %1350 = vmatpush1.msra.mxu0 0.0
        %1351 = vmatprep.subr.mxu0 0.0
        %1352 = vmatpush1.msra.mxu0 0.0
        %1353 = vmatprep.subr.mxu0 0.0
        %1354 = vmatpush1.msra.mxu0 0.0
        %1355 = vmatprep.subr.mxu0 0.0
        %1356 = vmatpush1.msra.mxu0 0.0
        %1357 = vmatprep.mubr.f32.mxu0 0.0
        %1358 = vmatmul.mubr.f32.gmra.mrb[0].mxu0 %v1291
        %v1359 = vpop.f32.mrb[0].mxu0
        %v1360 = vadd.f32 0.0, %v1359
        %v1361 = vpop.f32.mrb[0].mxu0
        %1362 = vdwg.mxu0
        %v1363 = vmul.f32 %v1360, %v1360
        %v1364 = vadd.f32 %v1288, %v1363
        %1365 = vrot.lane.b32.xlu0 %v981, 48
        %v1366 = vpop.permute.xlu0 %1365
        %v1367 = vsel %vm887, %v1366, 0
        %1369 = vmatprep.subr.mxu0 0.0
        %1370 = vmatpush1.msra.mxu0 %v985
        %1371 = vmatprep.subr.mxu0 0.0
        %1372 = vmatpush1.msra.mxu0 %v986
        %1373 = vmatprep.subr.mxu0 0.0
        %1374 = vmatpush1.msra.mxu0 0.0
        %1375 = vmatprep.subr.mxu0 0.0
        %1376 = vmatpush1.msra.mxu0 0.0
        %1377 = vmatprep.subr.mxu0 0.0
        %1378 = vmatpush1.msra.mxu0 0.0
        %1379 = vmatprep.subr.mxu0 0.0
        %1380 = vmatpush1.msra.mxu0 0.0
        %1381 = vmatprep.subr.mxu0 0.0
        %1382 = vmatpush1.msra.mxu0 0.0
        %1383 = vmatprep.subr.mxu0 0.0
        %1384 = vmatpush1.msra.mxu0 0.0
        %1385 = vmatprep.subr.mxu0 0.0
        %1386 = vmatpush1.msra.mxu0 0.0
        %1387 = vmatprep.subr.mxu0 0.0
        %1388 = vmatpush1.msra.mxu0 0.0
        %1389 = vmatprep.subr.mxu0 0.0
        %1390 = vmatpush1.msra.mxu0 0.0
        %1391 = vmatprep.subr.mxu0 0.0
        %1392 = vmatpush1.msra.mxu0 0.0
        %1393 = vmatprep.subr.mxu0 0.0
        %1394 = vmatpush1.msra.mxu0 0.0
        %1395 = vmatprep.subr.mxu0 0.0
        %1396 = vmatpush1.msra.mxu0 0.0
        %1397 = vmatprep.subr.mxu0 0.0
        %1398 = vmatpush1.msra.mxu0 0.0
        %1399 = vmatprep.subr.mxu0 0.0
        %1400 = vmatpush1.msra.mxu0 0.0
        %1401 = vmatprep.subr.mxu0 0.0
        %1402 = vmatpush1.msra.mxu0 0.0
        %1403 = vmatprep.subr.mxu0 0.0
        %1404 = vmatpush1.msra.mxu0 0.0
        %1405 = vmatprep.subr.mxu0 0.0
        %1406 = vmatpush1.msra.mxu0 0.0
        %1407 = vmatprep.subr.mxu0 0.0
        %1408 = vmatpush1.msra.mxu0 0.0
        %1409 = vmatprep.subr.mxu0 0.0
        %1410 = vmatpush1.msra.mxu0 0.0
        %1411 = vmatprep.subr.mxu0 0.0
        %1412 = vmatpush1.msra.mxu0 0.0
        %1413 = vmatprep.subr.mxu0 0.0
        %1414 = vmatpush1.msra.mxu0 0.0
        %1415 = vmatprep.subr.mxu0 0.0
        %1416 = vmatpush1.msra.mxu0 0.0
        %1417 = vmatprep.subr.mxu0 0.0
        %1418 = vmatpush1.msra.mxu0 0.0
        %1419 = vmatprep.subr.mxu0 0.0
        %1420 = vmatpush1.msra.mxu0 0.0
        %1421 = vmatprep.subr.mxu0 0.0
        %1422 = vmatpush1.msra.mxu0 0.0
        %1423 = vmatprep.subr.mxu0 0.0
        %1424 = vmatpush1.msra.mxu0 0.0
        %1425 = vmatprep.subr.mxu0 0.0
        %1426 = vmatpush1.msra.mxu0 0.0
        %1427 = vmatprep.subr.mxu0 0.0
        %1428 = vmatpush1.msra.mxu0 0.0
        %1429 = vmatprep.subr.mxu0 0.0
        %1430 = vmatpush1.msra.mxu0 0.0
        %1431 = vmatprep.subr.mxu0 0.0
        %1432 = vmatpush1.msra.mxu0 0.0
        %1433 = vmatprep.mubr.f32.mxu0 0.0
        %1434 = vmatmul.mubr.f32.gmra.mrb[0].mxu0 %v1367
        %v1435 = vpop.f32.mrb[0].mxu0
        %v1436 = vadd.f32 0.0, %v1435
        %v1437 = vpop.f32.mrb[0].mxu0
        %1438 = vdwg.mxu0
        %v1439 = vmul.f32 %v1436, %v1436
        %v1440 = vadd.f32 %v1364, %v1439
        %1441 = vrot.lane.b32.xlu0 %v981, 32
        %v1442 = vpop.permute.xlu0 %1441
        %v1443 = vsel %vm887, %v1442, 0
        %1445 = vmatprep.subr.mxu0 0.0
        %1446 = vmatpush1.msra.mxu0 %v985
        %1447 = vmatprep.subr.mxu0 0.0
        %1448 = vmatpush1.msra.mxu0 %v986
        %1449 = vmatprep.subr.mxu0 0.0
        %1450 = vmatpush1.msra.mxu0 0.0
        %1451 = vmatprep.subr.mxu0 0.0
        %1452 = vmatpush1.msra.mxu0 0.0
        %1453 = vmatprep.subr.mxu0 0.0
        %1454 = vmatpush1.msra.mxu0 0.0
        %1455 = vmatprep.subr.mxu0 0.0
        %1456 = vmatpush1.msra.mxu0 0.0
        %1457 = vmatprep.subr.mxu0 0.0
        %1458 = vmatpush1.msra.mxu0 0.0
        %1459 = vmatprep.subr.mxu0 0.0
        %1460 = vmatpush1.msra.mxu0 0.0
        %1461 = vmatprep.subr.mxu0 0.0
        %1462 = vmatpush1.msra.mxu0 0.0
        %1463 = vmatprep.subr.mxu0 0.0
        %1464 = vmatpush1.msra.mxu0 0.0
        %1465 = vmatprep.subr.mxu0 0.0
        %1466 = vmatpush1.msra.mxu0 0.0
        %1467 = vmatprep.subr.mxu0 0.0
        %1468 = vmatpush1.msra.mxu0 0.0
        %1469 = vmatprep.subr.mxu0 0.0
        %1470 = vmatpush1.msra.mxu0 0.0
        %1471 = vmatprep.subr.mxu0 0.0
        %1472 = vmatpush1.msra.mxu0 0.0
        %1473 = vmatprep.subr.mxu0 0.0
        %1474 = vmatpush1.msra.mxu0 0.0
        %1475 = vmatprep.subr.mxu0 0.0
        %1476 = vmatpush1.msra.mxu0 0.0
        %1477 = vmatprep.subr.mxu0 0.0
        %1478 = vmatpush1.msra.mxu0 0.0
        %1479 = vmatprep.subr.mxu0 0.0
        %1480 = vmatpush1.msra.mxu0 0.0
        %1481 = vmatprep.subr.mxu0 0.0
        %1482 = vmatpush1.msra.mxu0 0.0
        %1483 = vmatprep.subr.mxu0 0.0
        %1484 = vmatpush1.msra.mxu0 0.0
        %1485 = vmatprep.subr.mxu0 0.0
        %1486 = vmatpush1.msra.mxu0 0.0
        %1487 = vmatprep.subr.mxu0 0.0
        %1488 = vmatpush1.msra.mxu0 0.0
        %1489 = vmatprep.subr.mxu0 0.0
        %1490 = vmatpush1.msra.mxu0 0.0
        %1491 = vmatprep.subr.mxu0 0.0
        %1492 = vmatpush1.msra.mxu0 0.0
        %1493 = vmatprep.subr.mxu0 0.0
        %1494 = vmatpush1.msra.mxu0 0.0
        %1495 = vmatprep.subr.mxu0 0.0
        %1496 = vmatpush1.msra.mxu0 0.0
        %1497 = vmatprep.subr.mxu0 0.0
        %1498 = vmatpush1.msra.mxu0 0.0
        %1499 = vmatprep.subr.mxu0 0.0
        %1500 = vmatpush1.msra.mxu0 0.0
        %1501 = vmatprep.subr.mxu0 0.0
        %1502 = vmatpush1.msra.mxu0 0.0
        %1503 = vmatprep.subr.mxu0 0.0
        %1504 = vmatpush1.msra.mxu0 0.0
        %1505 = vmatprep.subr.mxu0 0.0
        %1506 = vmatpush1.msra.mxu0 0.0
        %1507 = vmatprep.subr.mxu0 0.0
        %1508 = vmatpush1.msra.mxu0 0.0
        %1509 = vmatprep.mubr.f32.mxu0 0.0
        %1510 = vmatmul.mubr.f32.gmra.mrb[0].mxu0 %v1443
        %v1511 = vpop.f32.mrb[0].mxu0
        %v1512 = vadd.f32 0.0, %v1511
        %v1513 = vpop.f32.mrb[0].mxu0
        %1514 = vdwg.mxu0
        %v1515 = vmul.f32 %v1512, %v1512
        %v1516 = vadd.f32 %v1440, %v1515
        %1517 = vrot.lane.b32.xlu0 %v981, 16
        %v1518 = vpop.permute.xlu0 %1517
        %v1519 = vsel %vm887, %v1518, 0
        %1521 = vmatprep.subr.mxu0 0.0
        %1522 = vmatpush1.msra.mxu0 %v985
        %1523 = vmatprep.subr.mxu0 0.0
        %1524 = vmatpush1.msra.mxu0 %v986
        %1525 = vmatprep.subr.mxu0 0.0
        %1526 = vmatpush1.msra.mxu0 0.0
        %1527 = vmatprep.subr.mxu0 0.0
        %1528 = vmatpush1.msra.mxu0 0.0
        %1529 = vmatprep.subr.mxu0 0.0
        %1530 = vmatpush1.msra.mxu0 0.0
        %1531 = vmatprep.subr.mxu0 0.0
        %1532 = vmatpush1.msra.mxu0 0.0
        %1533 = vmatprep.subr.mxu0 0.0
        %1534 = vmatpush1.msra.mxu0 0.0
        %1535 = vmatprep.subr.mxu0 0.0
        %1536 = vmatpush1.msra.mxu0 0.0
        %1537 = vmatprep.subr.mxu0 0.0
        %1538 = vmatpush1.msra.mxu0 0.0
        %1539 = vmatprep.subr.mxu0 0.0
        %1540 = vmatpush1.msra.mxu0 0.0
        %1541 = vmatprep.subr.mxu0 0.0
        %1542 = vmatpush1.msra.mxu0 0.0
        %1543 = vmatprep.subr.mxu0 0.0
        %1544 = vmatpush1.msra.mxu0 0.0
        %1545 = vmatprep.subr.mxu0 0.0
        %1546 = vmatpush1.msra.mxu0 0.0
        %1547 = vmatprep.subr.mxu0 0.0
        %1548 = vmatpush1.msra.mxu0 0.0
        %1549 = vmatprep.subr.mxu0 0.0
        %1550 = vmatpush1.msra.mxu0 0.0
        %1551 = vmatprep.subr.mxu0 0.0
        %1552 = vmatpush1.msra.mxu0 0.0
        %1553 = vmatprep.subr.mxu0 0.0
        %1554 = vmatpush1.msra.mxu0 0.0
        %1555 = vmatprep.subr.mxu0 0.0
        %1556 = vmatpush1.msra.mxu0 0.0
        %1557 = vmatprep.subr.mxu0 0.0
        %1558 = vmatpush1.msra.mxu0 0.0
        %1559 = vmatprep.subr.mxu0 0.0
        %1560 = vmatpush1.msra.mxu0 0.0
        %1561 = vmatprep.subr.mxu0 0.0
        %1562 = vmatpush1.msra.mxu0 0.0
        %1563 = vmatprep.subr.mxu0 0.0
        %1564 = vmatpush1.msra.mxu0 0.0
        %1565 = vmatprep.subr.mxu0 0.0
        %1566 = vmatpush1.msra.mxu0 0.0
        %1567 = vmatprep.subr.mxu0 0.0
        %1568 = vmatpush1.msra.mxu0 0.0
        %1569 = vmatprep.subr.mxu0 0.0
        %1570 = vmatpush1.msra.mxu0 0.0
        %1571 = vmatprep.subr.mxu0 0.0
        %1572 = vmatpush1.msra.mxu0 0.0
        %1573 = vmatprep.subr.mxu0 0.0
        %1574 = vmatpush1.msra.mxu0 0.0
        %1575 = vmatprep.subr.mxu0 0.0
        %1576 = vmatpush1.msra.mxu0 0.0
        %1577 = vmatprep.subr.mxu0 0.0
        %1578 = vmatpush1.msra.mxu0 0.0
        %1579 = vmatprep.subr.mxu0 0.0
        %1580 = vmatpush1.msra.mxu0 0.0
        %1581 = vmatprep.subr.mxu0 0.0
        %1582 = vmatpush1.msra.mxu0 0.0
        %1583 = vmatprep.subr.mxu0 0.0
        %1584 = vmatpush1.msra.mxu0 0.0
        %1585 = vmatprep.mubr.f32.mxu0 0.0
        %1586 = vmatmul.mubr.f32.gmra.mrb[0].mxu0 %v1519
        %v1587 = vpop.f32.mrb[0].mxu0
        %v1588 = vadd.f32 0.0, %v1587
        %v1589 = vpop.f32.mrb[0].mxu0
        %1590 = vdwg.mxu0
        %v1591 = vmul.f32 %v1588, %v1588
        %v1592 = vadd.f32 %v1516, %v1591
        %v1594 = vsel %vm887, %v983, 0
        %1596 = vmatprep.subr.mxu0 0.0
        %1597 = vmatpush1.msra.mxu0 %v985
        %1598 = vmatprep.subr.mxu0 0.0
        %1599 = vmatpush1.msra.mxu0 %v986
        %1600 = vmatprep.subr.mxu0 0.0
        %1601 = vmatpush1.msra.mxu0 0.0
        %1602 = vmatprep.subr.mxu0 0.0
        %1603 = vmatpush1.msra.mxu0 0.0
        %1604 = vmatprep.subr.mxu0 0.0
        %1605 = vmatpush1.msra.mxu0 0.0
        %1606 = vmatprep.subr.mxu0 0.0
        %1607 = vmatpush1.msra.mxu0 0.0
        %1608 = vmatprep.subr.mxu0 0.0
        %1609 = vmatpush1.msra.mxu0 0.0
        %1610 = vmatprep.subr.mxu0 0.0
        %1611 = vmatpush1.msra.mxu0 0.0
        %1612 = vmatprep.subr.mxu0 0.0
        %1613 = vmatpush1.msra.mxu0 0.0
        %1614 = vmatprep.subr.mxu0 0.0
        %1615 = vmatpush1.msra.mxu0 0.0
        %1616 = vmatprep.subr.mxu0 0.0
        %1617 = vmatpush1.msra.mxu0 0.0
        %1618 = vmatprep.subr.mxu0 0.0
        %1619 = vmatpush1.msra.mxu0 0.0
        %1620 = vmatprep.subr.mxu0 0.0
        %1621 = vmatpush1.msra.mxu0 0.0
        %1622 = vmatprep.subr.mxu0 0.0
        %1623 = vmatpush1.msra.mxu0 0.0
        %1624 = vmatprep.subr.mxu0 0.0
        %1625 = vmatpush1.msra.mxu0 0.0
        %1626 = vmatprep.subr.mxu0 0.0
        %1627 = vmatpush1.msra.mxu0 0.0
        %1628 = vmatprep.subr.mxu0 0.0
        %1629 = vmatpush1.msra.mxu0 0.0
        %1630 = vmatprep.subr.mxu0 0.0
        %1631 = vmatpush1.msra.mxu0 0.0
        %1632 = vmatprep.subr.mxu0 0.0
        %1633 = vmatpush1.msra.mxu0 0.0
        %1634 = vmatprep.subr.mxu0 0.0
        %1635 = vmatpush1.msra.mxu0 0.0
        %1636 = vmatprep.subr.mxu0 0.0
        %1637 = vmatpush1.msra.mxu0 0.0
        %1638 = vmatprep.subr.mxu0 0.0
        %1639 = vmatpush1.msra.mxu0 0.0
        %1640 = vmatprep.subr.mxu0 0.0
        %1641 = vmatpush1.msra.mxu0 0.0
        %1642 = vmatprep.subr.mxu0 0.0
        %1643 = vmatpush1.msra.mxu0 0.0
        %1644 = vmatprep.subr.mxu0 0.0
        %1645 = vmatpush1.msra.mxu0 0.0
        %1646 = vmatprep.subr.mxu0 0.0
        %1647 = vmatpush1.msra.mxu0 0.0
        %1648 = vmatprep.subr.mxu0 0.0
        %1649 = vmatpush1.msra.mxu0 0.0
        %1650 = vmatprep.subr.mxu0 0.0
        %1651 = vmatpush1.msra.mxu0 0.0
        %1652 = vmatprep.subr.mxu0 0.0
        %1653 = vmatpush1.msra.mxu0 0.0
        %1654 = vmatprep.subr.mxu0 0.0
        %1655 = vmatpush1.msra.mxu0 0.0
        %1656 = vmatprep.subr.mxu0 0.0
        %1657 = vmatpush1.msra.mxu0 0.0
        %1658 = vmatprep.subr.mxu0 0.0
        %1659 = vmatpush1.msra.mxu0 0.0
        %1660 = vmatprep.mubr.f32.mxu0 0.0
        %1661 = vmatmul.mubr.f32.gmra.mrb[0].mxu0 %v1594
        %v1662 = vpop.f32.mrb[0].mxu0
        %v1663 = vadd.f32 0.0, %v1662
        %v1664 = vpop.f32.mrb[0].mxu0
        %1665 = vdwg.mxu0
        %v1666 = vmul.f32 %v1663, %v1663
        %v1667 = vadd.f32 %v1592, %v1666
        %1668 = vrot.lane.b32.xlu0 %v983, 112
        %v1669 = vpop.permute.xlu0 %1668
        %v1670 = vsel %vm887, %v1669, 0
        %1672 = vmatprep.subr.mxu0 0.0
        %1673 = vmatpush1.msra.mxu0 %v985
        %1674 = vmatprep.subr.mxu0 0.0
        %1675 = vmatpush1.msra.mxu0 %v986
        %1676 = vmatprep.subr.mxu0 0.0
        %1677 = vmatpush1.msra.mxu0 0.0
        %1678 = vmatprep.subr.mxu0 0.0
        %1679 = vmatpush1.msra.mxu0 0.0
        %1680 = vmatprep.subr.mxu0 0.0
        %1681 = vmatpush1.msra.mxu0 0.0
        %1682 = vmatprep.subr.mxu0 0.0
        %1683 = vmatpush1.msra.mxu0 0.0
        %1684 = vmatprep.subr.mxu0 0.0
        %1685 = vmatpush1.msra.mxu0 0.0
        %1686 = vmatprep.subr.mxu0 0.0
        %1687 = vmatpush1.msra.mxu0 0.0
        %1688 = vmatprep.subr.mxu0 0.0
        %1689 = vmatpush1.msra.mxu0 0.0
        %1690 = vmatprep.subr.mxu0 0.0
        %1691 = vmatpush1.msra.mxu0 0.0
        %1692 = vmatprep.subr.mxu0 0.0
        %1693 = vmatpush1.msra.mxu0 0.0
        %1694 = vmatprep.subr.mxu0 0.0
        %1695 = vmatpush1.msra.mxu0 0.0
        %1696 = vmatprep.subr.mxu0 0.0
        %1697 = vmatpush1.msra.mxu0 0.0
        %1698 = vmatprep.subr.mxu0 0.0
        %1699 = vmatpush1.msra.mxu0 0.0
        %1700 = vmatprep.subr.mxu0 0.0
        %1701 = vmatpush1.msra.mxu0 0.0
        %1702 = vmatprep.subr.mxu0 0.0
        %1703 = vmatpush1.msra.mxu0 0.0
        %1704 = vmatprep.subr.mxu0 0.0
        %1705 = vmatpush1.msra.mxu0 0.0
        %1706 = vmatprep.subr.mxu0 0.0
        %1707 = vmatpush1.msra.mxu0 0.0
        %1708 = vmatprep.subr.mxu0 0.0
        %1709 = vmatpush1.msra.mxu0 0.0
        %1710 = vmatprep.subr.mxu0 0.0
        %1711 = vmatpush1.msra.mxu0 0.0
        %1712 = vmatprep.subr.mxu0 0.0
        %1713 = vmatpush1.msra.mxu0 0.0
        %1714 = vmatprep.subr.mxu0 0.0
        %1715 = vmatpush1.msra.mxu0 0.0
        %1716 = vmatprep.subr.mxu0 0.0
        %1717 = vmatpush1.msra.mxu0 0.0
        %1718 = vmatprep.subr.mxu0 0.0
        %1719 = vmatpush1.msra.mxu0 0.0
        %1720 = vmatprep.subr.mxu0 0.0
        %1721 = vmatpush1.msra.mxu0 0.0
        %1722 = vmatprep.subr.mxu0 0.0
        %1723 = vmatpush1.msra.mxu0 0.0
        %1724 = vmatprep.subr.mxu0 0.0
        %1725 = vmatpush1.msra.mxu0 0.0
        %1726 = vmatprep.subr.mxu0 0.0
        %1727 = vmatpush1.msra.mxu0 0.0
        %1728 = vmatprep.subr.mxu0 0.0
        %1729 = vmatpush1.msra.mxu0 0.0
        %1730 = vmatprep.subr.mxu0 0.0
        %1731 = vmatpush1.msra.mxu0 0.0
        %1732 = vmatprep.subr.mxu0 0.0
        %1733 = vmatpush1.msra.mxu0 0.0
        %1734 = vmatprep.subr.mxu0 0.0
        %1735 = vmatpush1.msra.mxu0 0.0
        %1736 = vmatprep.mubr.f32.mxu0 0.0
        %1737 = vmatmul.mubr.f32.gmra.mrb[0].mxu0 %v1670
        %v1738 = vpop.f32.mrb[0].mxu0
        %v1739 = vadd.f32 0.0, %v1738
        %v1740 = vpop.f32.mrb[0].mxu0
        %1741 = vdwg.mxu0
        %v1742 = vmul.f32 %v1739, %v1739
        %v1743 = vadd.f32 %v1667, %v1742
        %v1744 = vld [vmem:[%s6] sm:$0x3]
        %vm1745 = vcmask 15360
        %v1747 = vsel %vm1745, %v1744, 0
        %vm1749 = vcmask 1041408
        %v1751 = vsel %vm1749, %v1743, 0
        %1753 = vmatprep.subr.mxu0 0.0
        %1754 = vmatpush1.msra.mxu0 %v1751
        %1755 = vmatprep.subr.mxu0 0.0
        %1756 = vmatpush1.msra.mxu0 0.0
        %1757 = vmatprep.subr.mxu0 0.0
        %1758 = vmatpush1.msra.mxu0 0.0
        %1759 = vmatprep.subr.mxu0 0.0
        %1760 = vmatpush1.msra.mxu0 0.0
        %1761 = vmatprep.subr.mxu0 0.0
        %1762 = vmatpush1.msra.mxu0 0.0
        %1763 = vmatprep.subr.mxu0 0.0
        %1764 = vmatpush1.msra.mxu0 0.0
        %1765 = vmatprep.subr.mxu0 0.0
        %1766 = vmatpush1.msra.mxu0 0.0
        %1767 = vmatprep.subr.mxu0 0.0
        %1768 = vmatpush1.msra.mxu0 0.0
        %1769 = vmatprep.subr.mxu0 0.0
        %1770 = vmatpush1.msra.mxu0 0.0
        %1771 = vmatprep.subr.mxu0 0.0
        %1772 = vmatpush1.msra.mxu0 0.0
        %1773 = vmatprep.subr.mxu0 0.0
        %1774 = vmatpush1.msra.mxu0 0.0
        %1775 = vmatprep.subr.mxu0 0.0
        %1776 = vmatpush1.msra.mxu0 0.0
        %1777 = vmatprep.subr.mxu0 0.0
        %1778 = vmatpush1.msra.mxu0 0.0
        %1779 = vmatprep.subr.mxu0 0.0
        %1780 = vmatpush1.msra.mxu0 0.0
        %1781 = vmatprep.subr.mxu0 0.0
        %1782 = vmatpush1.msra.mxu0 0.0
        %1783 = vmatprep.subr.mxu0 0.0
        %1784 = vmatpush1.msra.mxu0 0.0
        %1785 = vmatprep.subr.mxu0 0.0
        %1786 = vmatpush1.msra.mxu0 0.0
        %1787 = vmatprep.subr.mxu0 0.0
        %1788 = vmatpush1.msra.mxu0 0.0
        %1789 = vmatprep.subr.mxu0 0.0
        %1790 = vmatpush1.msra.mxu0 0.0
        %1791 = vmatprep.subr.mxu0 0.0
        %1792 = vmatpush1.msra.mxu0 0.0
        %1793 = vmatprep.subr.mxu0 0.0
        %1794 = vmatpush1.msra.mxu0 0.0
        %1795 = vmatprep.subr.mxu0 0.0
        %1796 = vmatpush1.msra.mxu0 0.0
        %1797 = vmatprep.subr.mxu0 0.0
        %1798 = vmatpush1.msra.mxu0 0.0
        %1799 = vmatprep.subr.mxu0 0.0
        %1800 = vmatpush1.msra.mxu0 0.0
        %1801 = vmatprep.subr.mxu0 0.0
        %1802 = vmatpush1.msra.mxu0 0.0
        %1803 = vmatprep.subr.mxu0 0.0
        %1804 = vmatpush1.msra.mxu0 0.0
        %1805 = vmatprep.subr.mxu0 0.0
        %1806 = vmatpush1.msra.mxu0 0.0
        %1807 = vmatprep.subr.mxu0 0.0
        %1808 = vmatpush1.msra.mxu0 0.0
        %1809 = vmatprep.subr.mxu0 0.0
        %1810 = vmatpush1.msra.mxu0 0.0
        %1811 = vmatprep.subr.mxu0 0.0
        %1812 = vmatpush1.msra.mxu0 0.0
        %1813 = vmatprep.subr.mxu0 0.0
        %1814 = vmatpush1.msra.mxu0 0.0
        %1815 = vmatprep.subr.mxu0 0.0
        %1816 = vmatpush1.msra.mxu0 0.0
        %1817 = vmatprep.mubr.f32.mxu0 0.0
        %1818 = vmatmul.mubr.f32.gmra.mrb[0].mxu0 %v1747
        %v1819 = vpop.f32.mrb[0].mxu0
        %v1820 = vadd.f32 0.0, %v1819
        %v1821 = vpop.f32.mrb[0].mxu0
        %1822 = vdwg.mxu0
        %v1823 = vld [vmem:[%s7] sm:$0x3]
        %v1825 = vsel %vm1745, %v1820, 0
        %v1828 = vsel %vm1749, %v1823, 0
        %1830 = vmatprep.subr.mxu0 0.0
        %1831 = vmatpush1.msra.mxu0 %v1828
        %1832 = vmatprep.subr.mxu0 0.0
        %1833 = vmatpush1.msra.mxu0 0.0
        %1834 = vmatprep.subr.mxu0 0.0
        %1835 = vmatpush1.msra.mxu0 0.0
        %1836 = vmatprep.subr.mxu0 0.0
        %1837 = vmatpush1.msra.mxu0 0.0
        %1838 = vmatprep.subr.mxu0 0.0
        %1839 = vmatpush1.msra.mxu0 0.0
        %1840 = vmatprep.subr.mxu0 0.0
        %1841 = vmatpush1.msra.mxu0 0.0
        %1842 = vmatprep.subr.mxu0 0.0
        %1843 = vmatpush1.msra.mxu0 0.0
        %1844 = vmatprep.subr.mxu0 0.0
        %1845 = vmatpush1.msra.mxu0 0.0
        %1846 = vmatprep.subr.mxu0 0.0
        %1847 = vmatpush1.msra.mxu0 0.0
        %1848 = vmatprep.subr.mxu0 0.0
        %1849 = vmatpush1.msra.mxu0 0.0
        %1850 = vmatprep.subr.mxu0 0.0
        %1851 = vmatpush1.msra.mxu0 0.0
        %1852 = vmatprep.subr.mxu0 0.0
        %1853 = vmatpush1.msra.mxu0 0.0
        %1854 = vmatprep.subr.mxu0 0.0
        %1855 = vmatpush1.msra.mxu0 0.0
        %1856 = vmatprep.subr.mxu0 0.0
        %1857 = vmatpush1.msra.mxu0 0.0
        %1858 = vmatprep.subr.mxu0 0.0
        %1859 = vmatpush1.msra.mxu0 0.0
        %1860 = vmatprep.subr.mxu0 0.0
        %1861 = vmatpush1.msra.mxu0 0.0
        %1862 = vmatprep.subr.mxu0 0.0
        %1863 = vmatpush1.msra.mxu0 0.0
        %1864 = vmatprep.subr.mxu0 0.0
        %1865 = vmatpush1.msra.mxu0 0.0
        %1866 = vmatprep.subr.mxu0 0.0
        %1867 = vmatpush1.msra.mxu0 0.0
        %1868 = vmatprep.subr.mxu0 0.0
        %1869 = vmatpush1.msra.mxu0 0.0
        %1870 = vmatprep.subr.mxu0 0.0
        %1871 = vmatpush1.msra.mxu0 0.0
        %1872 = vmatprep.subr.mxu0 0.0
        %1873 = vmatpush1.msra.mxu0 0.0
        %1874 = vmatprep.subr.mxu0 0.0
        %1875 = vmatpush1.msra.mxu0 0.0
        %1876 = vmatprep.subr.mxu0 0.0
        %1877 = vmatpush1.msra.mxu0 0.0
        %1878 = vmatprep.subr.mxu0 0.0
        %1879 = vmatpush1.msra.mxu0 0.0
        %1880 = vmatprep.subr.mxu0 0.0
        %1881 = vmatpush1.msra.mxu0 0.0
        %1882 = vmatprep.subr.mxu0 0.0
        %1883 = vmatpush1.msra.mxu0 0.0
        %1884 = vmatprep.subr.mxu0 0.0
        %1885 = vmatpush1.msra.mxu0 0.0
        %1886 = vmatprep.subr.mxu0 0.0
        %1887 = vmatpush1.msra.mxu0 0.0
        %1888 = vmatprep.subr.mxu0 0.0
        %1889 = vmatpush1.msra.mxu0 0.0
        %1890 = vmatprep.subr.mxu0 0.0
        %1891 = vmatpush1.msra.mxu0 0.0
        %1892 = vmatprep.subr.mxu0 0.0
        %1893 = vmatpush1.msra.mxu0 0.0
        %1894 = vmatprep.mubr.f32.mxu0 0.0
        %1895 = vmatmul.mubr.f32.gmra.mrb[0].mxu0 %v1825
        %v1896 = vpop.f32.mrb[0].mxu0
        %v1897 = vadd.f32 1e-10, %v1896
        %v1898 = vpop.f32.mrb[0].mxu0
        %1899 = vdwg.mxu0
        %v1900 = vrsqrt.pop %v1897
        %1902 = vrot.lane.b32.xlu0 %v1132, 2
        %v1903 = vpop.permute.xlu0 %1902
        %1906 = vrot.lane.b32.xlu0 %v1208, 4
        %v1907 = vpop.permute.xlu0 %1906
        %1910 = vrot.lane.b32.xlu0 %v1284, 6
        %v1911 = vpop.permute.xlu0 %1910
        %1914 = vrot.lane.b32.xlu0 %v1360, 8
        %v1915 = vpop.permute.xlu0 %1914
        %1918 = vrot.lane.b32.xlu0 %v1436, 10
        %v1919 = vpop.permute.xlu0 %1918
        %1922 = vrot.lane.b32.xlu0 %v1512, 12
        %v1923 = vpop.permute.xlu0 %1922
        %1926 = vrot.lane.b32.xlu0 %v1588, 14
        %v1927 = vpop.permute.xlu0 %1926
        %1930 = vrot.lane.b32.xlu0 %v1663, 16
        %v1931 = vpop.permute.xlu0 %1930
        %1934 = vrot.lane.b32.xlu0 %v1739, 18
        %v1935 = vpop.permute.xlu0 %1934
        %v1937 = vsel %vm1745, %v1057, %v1903
        %vm1938 = vcmask 31744
        %v1939 = vsel %vm1938, %v1937, %v1907
        %vm1940 = vcmask 48128
        %v1941 = vsel %vm1940, %v1939, %v1911
        %vm1942 = vcmask 64512
        %v1943 = vsel %vm1942, %v1941, %v1915
        %vm1944 = vcmask 80896
        %v1945 = vsel %vm1944, %v1943, %v1919
        %vm1946 = vcmask 97280
        %v1947 = vsel %vm1946, %v1945, %v1923
        %vm1948 = vcmask 113664
        %v1949 = vsel %vm1948, %v1947, %v1927
        %v1950 = vsel %vm887, %v1949, %v1931
        %vm1951 = vcmask 146432
        %v1952 = vsel %vm1951, %v1950, %v1935
        %1954 = vrot.lane.b32.xlu0 %v1900, 2
        %v1955 = vpop.permute.xlu0 %1954
        %1957 = vrot.lane.b32.xlu0 %v1900, 4
        %v1958 = vpop.permute.xlu0 %1957
        %1960 = vrot.lane.b32.xlu0 %v1900, 6
        %v1961 = vpop.permute.xlu0 %1960
        %1963 = vrot.lane.b32.xlu0 %v1900, 8
        %v1964 = vpop.permute.xlu0 %1963
        %1966 = vrot.lane.b32.xlu0 %v1900, 10
        %v1967 = vpop.permute.xlu0 %1966
        %1969 = vrot.lane.b32.xlu0 %v1900, 12
        %v1970 = vpop.permute.xlu0 %1969
        %1972 = vrot.lane.b32.xlu0 %v1900, 14
        %v1973 = vpop.permute.xlu0 %1972
        %1975 = vrot.lane.b32.xlu0 %v1900, 16
        %v1976 = vpop.permute.xlu0 %1975
        %1978 = vrot.lane.b32.xlu0 %v1900, 18
        %v1979 = vpop.permute.xlu0 %1978
        %v1981 = vsel %vm1745, %v1900, %v1955
        %v1982 = vsel %vm1938, %v1981, %v1958
        %v1983 = vsel %vm1940, %v1982, %v1961
        %v1984 = vsel %vm1942, %v1983, %v1964
        %v1985 = vsel %vm1944, %v1984, %v1967
        %v1986 = vsel %vm1946, %v1985, %v1970
        %v1987 = vsel %vm1948, %v1986, %v1973
        %v1988 = vsel %vm887, %v1987, %v1976
        %v1989 = vsel %vm1951, %v1988, %v1979
        %v1990 = vmul.f32 %v1952, %v1989
        %vm1991 = vcmask 156672
        %1992 = vst.msk [vmem:[%s462] sm:$0x3] %vm1991, %v1990
        %s1993 = sand.u32 %s256, 1
        %s1994 = scalar_lea.sflag [#allocation4], %s1993
        %s1995 = sand.u32 %s256, 1
        %s1996 = smul.addr %s1995, 2
        %s1997 = scalar_lea.vmem [#allocation10], %s1996
        // Predicated region
        $region69: #{tpu_custom_call.1} parent=51 // pred_check
          %p1998 = pneg %p266
        $region70: #{tpu_custom_call.1} parent=51 // pred_check_branch
          %2000 = sbr.rel (%p1998) target = $region72
        $region71: #{tpu_custom_call.1} parent=51 // pred_region
          %s2002 = ssub.s32 32, 32
          %2003 = vsyncadd %s1994, %s2002
          %s2004 = sadd.s32 %s34, %s33
          %s2005 = smul.addr %s2004, 32
          %s2006 = scalar_lea.hbm %s8, %s2005
          %s2008 = sshll.u32 %s1997, 4
          %s2009 = int_to_ptr.vmem [resolvable:$true] %s2008
          %2011 = dma.vmem_to_hbm [thread:$0]  %s2009, 32, %s2006, %s1994
        $region72: #{tpu_custom_call.1} parent=51 // pred_fallthru
          _
      $region52: #{tpu_custom_call.1} parent=5 // pred_fallthru
        _
      %p2012 = scmp.le.s32.totalorder 2, %s24
      // Predicated region
      $region73: #{tpu_custom_call.1} parent=5 // pred_check
        %p2013 = pneg %p2012
      $region74: #{tpu_custom_call.1} parent=5 // pred_check_branch
        %2015 = sbr.rel (%p2013) target = $region76
      $region75: #{tpu_custom_call.1} parent=5 // pred_region
        %s2016 = ssub.s32 %s24, 2
        // Predicated region
        $region77: #{tpu_custom_call.1} parent=75 // pred_check
          %p2017 = pneg %p272
        $region78: #{tpu_custom_call.1} parent=75 // pred_check_branch
          %2019 = sbr.rel (%p2017) target = $region80
        $region79: #{tpu_custom_call.1} parent=75 // pred_region
          %s2020 = sand.u32 %s257, 1
          %s2021 = scalar_lea.sflag [#allocation4], %s2020
          %s2022 = sand.u32 %s257, 1
          %s2023 = smul.addr %s2022, 2
          %s2024 = scalar_lea.vmem [#allocation10], %s2023
          %2025 = dma.done %s2021, 32
        $region80: #{tpu_custom_call.1} parent=75 // pred_fallthru
          _
      $region76: #{tpu_custom_call.1} parent=5 // pred_fallthru
        _
    $region6: #{tpu_custom_call.1} parent=1 // loop_footer
      %s28 = sadd.s32 1, %s24
    $region7: #{tpu_custom_call.1} parent=1 // loop_footer_branch
      %23 = sbr.rel target = $region3
    $region8: #{tpu_custom_call.1} parent=1 // loop_exit
      _
    %2026 = vsyncpa [#allocation3], 1
    %s2027 = scalar_lea.sflag [#allocation3], 1
    %2028 = vsyncpa %s2027, 1
    %2029 = vsyncpa [#allocation7], 1
    %s2030 = scalar_lea.sflag [#allocation7], 1
    %2031 = vsyncpa %s2030, 1
    %2032 = vsyncpa [#allocation4], 1
    %s2033 = scalar_lea.sflag [#allocation4], 1
    %2034 = vsyncpa %s2033, 1
    %2035 = vsyncpa [#allocation5], 1
    %s2036 = scalar_lea.sflag [#allocation5], 1
    %2037 = vsyncpa %s2036, 1

</llo_original>
